<compile_context>
chip_gen: v7x
topology: tpu7x:2x2x1
jax: 0.10.0
libtpu: 0.0.40
codegen_flags: <defaults>
</compile_context>

<pallas_src>
import functools

import jax
import jax.numpy as jnp
from jax import lax
from jax.experimental import pallas as pl
from jax.experimental.pallas import tpu as pltpu


def _softmax_lastdim(x):
    m = jnp.max(x, axis=-1, keepdims=True)
    e = jnp.exp(x - m)
    return e / jnp.sum(e, axis=-1, keepdims=True)


def _coattn_kernel(v_ref, q_ref, wb_ref, wv_ref, wq_ref, whv_ref, whq_ref,
                   out_ref, *, B, Nv, T):
    f32 = jnp.float32
    Wb = wb_ref[...]      # (d, d)
    Wv = wv_ref[...]      # (k, d)
    Wq = wq_ref[...]      # (k, d)
    whv = whv_ref[...]    # (k, 1)
    whq = whq_ref[...]    # (k, 1)

    for b in range(B):    # B is tiny; fully unrolled, no grid overhead
        Vb = v_ref[b]     # (d, Nv)  == V[b]
        Qb = q_ref[b]     # (T, d)   == Q[b]

        # Wb @ V[b]
        WbVb = jnp.dot(Wb, Vb, preferred_element_type=f32)            # (d, Nv)
        # C = Q[b] @ (Wb V[b])
        C = jnp.dot(Qb, WbVb, preferred_element_type=f32)             # (T, Nv)
        # Wv @ V[b]
        WvVb = jnp.dot(Wv, Vb, preferred_element_type=f32)            # (k, Nv)
        # Wq @ Q[b]^T, contracted over the hidden dim (no transpose).
        WqQtb = lax.dot_general(Wq, Qb,
                                dimension_numbers=(((1,), (1,)), ((), ())),
                                preferred_element_type=f32)           # (k, T)

        H_v = jnp.tanh(WvVb + jnp.dot(WqQtb, C,
                                      preferred_element_type=f32))    # (k, Nv)
        # (Wv V) @ C^T as a contraction over Nv (no C.T materialization).
        H_q = jnp.tanh(WqQtb + lax.dot_general(
            WvVb, C, dimension_numbers=(((1,), (1,)), ((), ())),
            preferred_element_type=f32))                              # (k, T)

        # w_h{v,q}^T @ H_{v,q}: VPU broadcast-mul + XLU sublane reduce
        # (cheaper than an M=1 MXU round-trip on the critical path).
        s_v = jnp.sum(whv * H_v, axis=0, keepdims=True)               # (1, Nv)
        s_q = jnp.sum(whq * H_q, axis=0, keepdims=True)               # (1, T)

        a_v = _softmax_lastdim(s_v)                                   # (1, Nv)
        a_q = _softmax_lastdim(s_q)                                   # (1, T)

        # v = a_v @ V[b]^T  -> contract Nv against Vb's lane dim.
        v_b = lax.dot_general(a_v, Vb,
                              dimension_numbers=(((1,), (1,)), ((), ())),
                              preferred_element_type=f32)             # (1, d)
        # Literal torch quirk: q = a_q @ Q[b]^T, valid only because T == d;
        # a_q's T contracts against Q[b]'s hidden dim.
        q_b = lax.dot_general(a_q, Qb,
                              dimension_numbers=(((1,), (1,)), ((), ())),
                              preferred_element_type=f32)             # (1, T)

        # Direct per-batch stores into the combined (2B, d) slab.
        out_ref[b:b + 1, :] = v_b
        out_ref[B + b:B + b + 1, :] = q_b


def parallel_co_attention(V, Q, Q_lengths, params):
    """Pallas implementation of ParallelCoAttentionNetwork.forward."""
    del Q_lengths  # TODO(synk): Q_lengths / src_length_masking are unused in the given forward.
    B, d, Nv = V.shape
    Bq, T, d2 = Q.shape
    assert B == Bq and d == d2
    # The literal forward (q = a_q @ Q^T) is only shape-valid when T == d.
    assert T == d, "the given forward requires seq_len == hidden_dim"
    k = params["W_v"].shape[0]
    assert params["w_hv"].shape == (k, 1) and params["w_hq"].shape == (k, 1)

    kernel = functools.partial(_coattn_kernel, B=B, Nv=Nv, T=T)
    vmem = pl.BlockSpec(memory_space=pltpu.MemorySpace.VMEM)

    # Single lane-dense output slab: rows [0, B) are v, rows [B, 2B) are q.
    out = pl.pallas_call(
        kernel,
        out_shape=jax.ShapeDtypeStruct((2 * B, d), jnp.float32),
        in_specs=[vmem] * 7,
        out_specs=vmem,
    )(V.astype(jnp.float32),
      Q.astype(jnp.float32),
      params["W_b"].astype(jnp.float32),
      params["W_v"].astype(jnp.float32),
      params["W_q"].astype(jnp.float32),
      params["w_hv"].astype(jnp.float32),
      params["w_hq"].astype(jnp.float32))

    v_out = out[:B]   # (B, d)
    q_out = out[B:]   # (B, T)
    if B == 1:
        # torch.squeeze removes all size-1 dims.
        v_out = v_out[0]
        q_out = q_out[0]
    return v_out, q_out


def reference_forward(V, Q, params):
    """Pure-JAX replica of the PyTorch forward (for numerical checking)."""
    Wb, Wv, Wq, whv, whq = (params["W_b"], params["W_v"], params["W_q"],
                            params["w_hv"], params["w_hq"])
    Qt = jnp.transpose(Q, (0, 2, 1))
    C = jnp.matmul(Q, jnp.matmul(Wb, V))
    H_v = jnp.tanh(jnp.matmul(Wv, V) + jnp.matmul(jnp.matmul(Wq, Qt), C))
    H_q = jnp.tanh(jnp.matmul(Wq, Qt) + jnp.matmul(jnp.matmul(Wv, V),
                                                   jnp.transpose(C, (0, 2, 1))))
    a_v = jax.nn.softmax(jnp.matmul(whv.T, H_v), axis=2)
    a_q = jax.nn.softmax(jnp.matmul(whq.T, H_q), axis=2)
    v = jnp.squeeze(jnp.matmul(a_v, jnp.transpose(V, (0, 2, 1))))
    q = jnp.squeeze(jnp.matmul(a_q, Qt))
    return v, q


if __name__ == "__main__":
    B = 2
    hidden_dim = 32      # d
    co_attn_dim = 16     # k
    Nv = 16              # number of visual regions
    T = 32               # seq length (must equal hidden_dim for the literal forward)

    key = jax.random.PRNGKey(0)
    k1, k2, k3, k4, k5, k6, k7 = jax.random.split(key, 7)

    # deterministic "torch.randn"-style params
    params = {
        "W_b":  jax.random.normal(k1, (hidden_dim, hidden_dim), jnp.float32),
        "W_v":  jax.random.normal(k2, (co_attn_dim, hidden_dim), jnp.float32),
        "W_q":  jax.random.normal(k3, (co_attn_dim, hidden_dim), jnp.float32),
        "w_hv": jax.random.normal(k4, (co_attn_dim, 1), jnp.float32),
        "w_hq": jax.random.normal(k5, (co_attn_dim, 1), jnp.float32),
    }

    V = jax.random.normal(k6, (B, hidden_dim, Nv), jnp.float32)
    Q = jax.random.normal(k7, (B, T, hidden_dim), jnp.float32)
    Q_lengths = jnp.array([T, T // 2], dtype=jnp.int32)  # unused by the forward

    v_out, q_out = parallel_co_attention(V, Q, Q_lengths, params)
    v_out = jax.block_until_ready(v_out)
    q_out = jax.block_until_ready(q_out)

    v_ref, q_ref = reference_forward(V, Q, params)
    assert v_out.shape == v_ref.shape and q_out.shape == q_ref.shape
    assert jnp.allclose(v_out, v_ref, rtol=1e-2, atol=1e-2)
    assert jnp.allclose(q_out, q_ref, rtol=1e-2, atol=1e-2)

    print("KERNEL_OK")
</pallas_src>

<mosaic_0001>
module attributes {stable_mosaic.version = 11 : i64} {
  func.func @_coattn_kernel(%arg0: memref<2x32x16xf32, #tpu.memory_space<vmem>>, %arg1: memref<2x32x32xf32, #tpu.memory_space<vmem>>, %arg2: memref<32x32xf32, #tpu.memory_space<vmem>>, %arg3: memref<16x32xf32, #tpu.memory_space<vmem>>, %arg4: memref<16x32xf32, #tpu.memory_space<vmem>>, %arg5: memref<16x1xf32, #tpu.memory_space<vmem>>, %arg6: memref<16x1xf32, #tpu.memory_space<vmem>>, %arg7: memref<4x32xf32, #tpu.memory_space<vmem>>) attributes {dimension_semantics = [], scalar_prefetch = 0 : i64, scratch_operands = 0 : i64, tpu.core_type = #tpu.core_type<tc>} {
    %c0 = arith.constant 0 : index
    %c0_0 = arith.constant 0 : index
    %0 = vector.load %arg2[%c0, %c0_0] : memref<32x32xf32, #tpu.memory_space<vmem>>, vector<32x32xf32>
    %c0_1 = arith.constant 0 : index
    %c0_2 = arith.constant 0 : index
    %1 = vector.load %arg3[%c0_1, %c0_2] : memref<16x32xf32, #tpu.memory_space<vmem>>, vector<16x32xf32>
    %c0_3 = arith.constant 0 : index
    %c0_4 = arith.constant 0 : index
    %2 = vector.load %arg4[%c0_3, %c0_4] : memref<16x32xf32, #tpu.memory_space<vmem>>, vector<16x32xf32>
    %c0_5 = arith.constant 0 : index
    %c0_6 = arith.constant 0 : index
    %3 = vector.load %arg5[%c0_5, %c0_6] : memref<16x1xf32, #tpu.memory_space<vmem>>, vector<16x1xf32>
    %c0_7 = arith.constant 0 : index
    %c0_8 = arith.constant 0 : index
    %4 = vector.load %arg6[%c0_7, %c0_8] : memref<16x1xf32, #tpu.memory_space<vmem>>, vector<16x1xf32>
    %c0_9 = arith.constant 0 : index
    %c0_10 = arith.constant 0 : index
    %c0_11 = arith.constant 0 : index
    %5 = vector.load %arg0[%c0_9, %c0_10, %c0_11] : memref<2x32x16xf32, #tpu.memory_space<vmem>>, vector<1x32x16xf32>
    %6 = vector.shape_cast %5 : vector<1x32x16xf32> to vector<32x16xf32>
    %c0_12 = arith.constant 0 : index
    %c0_13 = arith.constant 0 : index
    %c0_14 = arith.constant 0 : index
    %7 = vector.load %arg1[%c0_12, %c0_13, %c0_14] : memref<2x32x32xf32, #tpu.memory_space<vmem>>, vector<1x32x32xf32>
    %8 = vector.shape_cast %7 : vector<1x32x32xf32> to vector<32x32xf32>
    %cst = arith.constant dense<0.000000e+00> : vector<32x16xf32>
    %9 = tpu.matmul %0, %6, %cst {dimension_numbers = #tpu.dot_dimension_numbers<[1], [0], [0], [1], [0, 0, 1, 1], [], []>} : vector<32x32xf32>, vector<32x16xf32>, vector<32x16xf32> -> vector<32x16xf32>
    %cst_15 = arith.constant dense<0.000000e+00> : vector<32x16xf32>
    %10 = tpu.matmul %8, %9, %cst_15 {dimension_numbers = #tpu.dot_dimension_numbers<[1], [0], [0], [1], [0, 0, 1, 1], [], []>} : vector<32x32xf32>, vector<32x16xf32>, vector<32x16xf32> -> vector<32x16xf32>
    %cst_16 = arith.constant dense<0.000000e+00> : vector<16x16xf32>
    %11 = tpu.matmul %1, %6, %cst_16 {dimension_numbers = #tpu.dot_dimension_numbers<[1], [0], [0], [1], [0, 0, 1, 1], [], []>} : vector<16x32xf32>, vector<32x16xf32>, vector<16x16xf32> -> vector<16x16xf32>
    %cst_17 = arith.constant dense<0.000000e+00> : vector<16x32xf32>
    %12 = tpu.matmul %2, %8, %cst_17 {dimension_numbers = #tpu.dot_dimension_numbers<[1], [1], [0], [0], [0, 0, 1, 0], [], []>} : vector<16x32xf32>, vector<32x32xf32>, vector<16x32xf32> -> vector<16x32xf32>
    %cst_18 = arith.constant dense<0.000000e+00> : vector<16x16xf32>
    %13 = tpu.matmul %12, %10, %cst_18 {dimension_numbers = #tpu.dot_dimension_numbers<[1], [0], [0], [1], [0, 0, 1, 1], [], []>} : vector<16x32xf32>, vector<32x16xf32>, vector<16x16xf32> -> vector<16x16xf32>
    %14 = arith.addf %11, %13 : vector<16x16xf32>
    %15 = math.tanh %14 : vector<16x16xf32>
    %cst_19 = arith.constant dense<0.000000e+00> : vector<16x32xf32>
    %16 = tpu.matmul %11, %10, %cst_19 {dimension_numbers = #tpu.dot_dimension_numbers<[1], [1], [0], [0], [0, 0, 1, 0], [], []>} : vector<16x16xf32>, vector<32x16xf32>, vector<16x32xf32> -> vector<16x32xf32>
    %17 = arith.addf %12, %16 : vector<16x32xf32>
    %18 = math.tanh %17 : vector<16x32xf32>
    %19 = vector.broadcast %3 : vector<16x1xf32> to vector<16x16xf32>
    %20 = arith.mulf %19, %15 : vector<16x16xf32>
    %cst_20 = arith.constant dense<0.000000e+00> : vector<16xf32>
    %21 = vector.multi_reduction <add>, %20, %cst_20 [0] : vector<16x16xf32> to vector<16xf32>
    %22 = vector.shape_cast %21 : vector<16xf32> to vector<1x16xf32>
    %23 = vector.broadcast %4 : vector<16x1xf32> to vector<16x32xf32>
    %24 = arith.mulf %23, %18 : vector<16x32xf32>
    %cst_21 = arith.constant dense<0.000000e+00> : vector<32xf32>
    %25 = vector.multi_reduction <add>, %24, %cst_21 [0] : vector<16x32xf32> to vector<32xf32>
    %26 = vector.shape_cast %25 : vector<32xf32> to vector<1x32xf32>
    %cst_22 = arith.constant dense<0xFF800000> : vector<1xf32>
    %27 = vector.multi_reduction <maximumf>, %22, %cst_22 [1] : vector<1x16xf32> to vector<1xf32>
    %28 = vector.shape_cast %27 : vector<1xf32> to vector<1x1xf32>
    %29 = vector.broadcast %28 : vector<1x1xf32> to vector<1x16xf32>
    %30 = arith.subf %22, %29 : vector<1x16xf32>
    %31 = math.exp %30 : vector<1x16xf32>
    %cst_23 = arith.constant dense<0.000000e+00> : vector<1xf32>
    %32 = vector.multi_reduction <add>, %31, %cst_23 [1] : vector<1x16xf32> to vector<1xf32>
    %33 = vector.shape_cast %32 : vector<1xf32> to vector<1x1xf32>
    %34 = vector.broadcast %33 : vector<1x1xf32> to vector<1x16xf32>
    %35 = arith.divf %31, %34 : vector<1x16xf32>
    %cst_24 = arith.constant dense<0xFF800000> : vector<1xf32>
    %36 = vector.multi_reduction <maximumf>, %26, %cst_24 [1] : vector<1x32xf32> to vector<1xf32>
    %37 = vector.shape_cast %36 : vector<1xf32> to vector<1x1xf32>
    %38 = vector.broadcast %37 : vector<1x1xf32> to vector<1x32xf32>
    %39 = arith.subf %26, %38 : vector<1x32xf32>
    %40 = math.exp %39 : vector<1x32xf32>
    %cst_25 = arith.constant dense<0.000000e+00> : vector<1xf32>
    %41 = vector.multi_reduction <add>, %40, %cst_25 [1] : vector<1x32xf32> to vector<1xf32>
    %42 = vector.shape_cast %41 : vector<1xf32> to vector<1x1xf32>
    %43 = vector.broadcast %42 : vector<1x1xf32> to vector<1x32xf32>
    %44 = arith.divf %40, %43 : vector<1x32xf32>
    %cst_26 = arith.constant dense<0.000000e+00> : vector<1x32xf32>
    %45 = tpu.matmul %35, %6, %cst_26 {dimension_numbers = #tpu.dot_dimension_numbers<[1], [1], [0], [0], [0, 0, 1, 0], [], []>} : vector<1x16xf32>, vector<32x16xf32>, vector<1x32xf32> -> vector<1x32xf32>
    %cst_27 = arith.constant dense<0.000000e+00> : vector<1x32xf32>
    %46 = tpu.matmul %44, %8, %cst_27 {dimension_numbers = #tpu.dot_dimension_numbers<[1], [1], [0], [0], [0, 0, 1, 0], [], []>} : vector<1x32xf32>, vector<32x32xf32>, vector<1x32xf32> -> vector<1x32xf32>
    %c0_28 = arith.constant 0 : index
    %c0_29 = arith.constant 0 : index
    %47 = vector.load %arg7[%c0_28, %c0_29] : memref<4x32xf32, #tpu.memory_space<vmem>>, vector<1x32xf32>
    tpu.vector_store %arg7[%c0_28, %c0_29], %45 {strides = array<i32>} : memref<4x32xf32, #tpu.memory_space<vmem>>, vector<1x32xf32>,
    %c2 = arith.constant 2 : index
    %c0_30 = arith.constant 0 : index
    %48 = vector.load %arg7[%c2, %c0_30] : memref<4x32xf32, #tpu.memory_space<vmem>>, vector<1x32xf32>
    tpu.vector_store %arg7[%c2, %c0_30], %46 {strides = array<i32>} : memref<4x32xf32, #tpu.memory_space<vmem>>, vector<1x32xf32>,
    %c1 = arith.constant 1 : index
    %c0_31 = arith.constant 0 : index
    %c0_32 = arith.constant 0 : index
    %49 = vector.load %arg0[%c1, %c0_31, %c0_32] : memref<2x32x16xf32, #tpu.memory_space<vmem>>, vector<1x32x16xf32>
    %50 = vector.shape_cast %49 : vector<1x32x16xf32> to vector<32x16xf32>
    %c1_33 = arith.constant 1 : index
    %c0_34 = arith.constant 0 : index
    %c0_35 = arith.constant 0 : index
    %51 = vector.load %arg1[%c1_33, %c0_34, %c0_35] : memref<2x32x32xf32, #tpu.memory_space<vmem>>, vector<1x32x32xf32>
    %52 = vector.shape_cast %51 : vector<1x32x32xf32> to vector<32x32xf32>
    %cst_36 = arith.constant dense<0.000000e+00> : vector<32x16xf32>
    %53 = tpu.matmul %0, %50, %cst_36 {dimension_numbers = #tpu.dot_dimension_numbers<[1], [0], [0], [1], [0, 0, 1, 1], [], []>} : vector<32x32xf32>, vector<32x16xf32>, vector<32x16xf32> -> vector<32x16xf32>
    %cst_37 = arith.constant dense<0.000000e+00> : vector<32x16xf32>
    %54 = tpu.matmul %52, %53, %cst_37 {dimension_numbers = #tpu.dot_dimension_numbers<[1], [0], [0], [1], [0, 0, 1, 1], [], []>} : vector<32x32xf32>, vector<32x16xf32>, vector<32x16xf32> -> vector<32x16xf32>
    %cst_38 = arith.constant dense<0.000000e+00> : vector<16x16xf32>
    %55 = tpu.matmul %1, %50, %cst_38 {dimension_numbers = #tpu.dot_dimension_numbers<[1], [0], [0], [1], [0, 0, 1, 1], [], []>} : vector<16x32xf32>, vector<32x16xf32>, vector<16x16xf32> -> vector<16x16xf32>
    %cst_39 = arith.constant dense<0.000000e+00> : vector<16x32xf32>
    %56 = tpu.matmul %2, %52, %cst_39 {dimension_numbers = #tpu.dot_dimension_numbers<[1], [1], [0], [0], [0, 0, 1, 0], [], []>} : vector<16x32xf32>, vector<32x32xf32>, vector<16x32xf32> -> vector<16x32xf32>
    %cst_40 = arith.constant dense<0.000000e+00> : vector<16x16xf32>
    %57 = tpu.matmul %56, %54, %cst_40 {dimension_numbers = #tpu.dot_dimension_numbers<[1], [0], [0], [1], [0, 0, 1, 1], [], []>} : vector<16x32xf32>, vector<32x16xf32>, vector<16x16xf32> -> vector<16x16xf32>
    %58 = arith.addf %55, %57 : vector<16x16xf32>
    %59 = math.tanh %58 : vector<16x16xf32>
    %cst_41 = arith.constant dense<0.000000e+00> : vector<16x32xf32>
    %60 = tpu.matmul %55, %54, %cst_41 {dimension_numbers = #tpu.dot_dimension_numbers<[1], [1], [0], [0], [0, 0, 1, 0], [], []>} : vector<16x16xf32>, vector<32x16xf32>, vector<16x32xf32> -> vector<16x32xf32>
    %61 = arith.addf %56, %60 : vector<16x32xf32>
    %62 = math.tanh %61 : vector<16x32xf32>
    %63 = vector.broadcast %3 : vector<16x1xf32> to vector<16x16xf32>
    %64 = arith.mulf %63, %59 : vector<16x16xf32>
    %cst_42 = arith.constant dense<0.000000e+00> : vector<16xf32>
    %65 = vector.multi_reduction <add>, %64, %cst_42 [0] : vector<16x16xf32> to vector<16xf32>
    %66 = vector.shape_cast %65 : vector<16xf32> to vector<1x16xf32>
    %67 = vector.broadcast %4 : vector<16x1xf32> to vector<16x32xf32>
    %68 = arith.mulf %67, %62 : vector<16x32xf32>
    %cst_43 = arith.constant dense<0.000000e+00> : vector<32xf32>
    %69 = vector.multi_reduction <add>, %68, %cst_43 [0] : vector<16x32xf32> to vector<32xf32>
    %70 = vector.shape_cast %69 : vector<32xf32> to vector<1x32xf32>
    %cst_44 = arith.constant dense<0xFF800000> : vector<1xf32>
    %71 = vector.multi_reduction <maximumf>, %66, %cst_44 [1] : vector<1x16xf32> to vector<1xf32>
    %72 = vector.shape_cast %71 : vector<1xf32> to vector<1x1xf32>
    %73 = vector.broadcast %72 : vector<1x1xf32> to vector<1x16xf32>
    %74 = arith.subf %66, %73 : vector<1x16xf32>
    %75 = math.exp %74 : vector<1x16xf32>
    %cst_45 = arith.constant dense<0.000000e+00> : vector<1xf32>
    %76 = vector.multi_reduction <add>, %75, %cst_45 [1] : vector<1x16xf32> to vector<1xf32>
    %77 = vector.shape_cast %76 : vector<1xf32> to vector<1x1xf32>
    %78 = vector.broadcast %77 : vector<1x1xf32> to vector<1x16xf32>
    %79 = arith.divf %75, %78 : vector<1x16xf32>
    %cst_46 = arith.constant dense<0xFF800000> : vector<1xf32>
    %80 = vector.multi_reduction <maximumf>, %70, %cst_46 [1] : vector<1x32xf32> to vector<1xf32>
    %81 = vector.shape_cast %80 : vector<1xf32> to vector<1x1xf32>
    %82 = vector.broadcast %81 : vector<1x1xf32> to vector<1x32xf32>
    %83 = arith.subf %70, %82 : vector<1x32xf32>
    %84 = math.exp %83 : vector<1x32xf32>
    %cst_47 = arith.constant dense<0.000000e+00> : vector<1xf32>
    %85 = vector.multi_reduction <add>, %84, %cst_47 [1] : vector<1x32xf32> to vector<1xf32>
    %86 = vector.shape_cast %85 : vector<1xf32> to vector<1x1xf32>
    %87 = vector.broadcast %86 : vector<1x1xf32> to vector<1x32xf32>
    %88 = arith.divf %84, %87 : vector<1x32xf32>
    %cst_48 = arith.constant dense<0.000000e+00> : vector<1x32xf32>
    %89 = tpu.matmul %79, %50, %cst_48 {dimension_numbers = #tpu.dot_dimension_numbers<[1], [1], [0], [0], [0, 0, 1, 0], [], []>} : vector<1x16xf32>, vector<32x16xf32>, vector<1x32xf32> -> vector<1x32xf32>
    %cst_49 = arith.constant dense<0.000000e+00> : vector<1x32xf32>
    %90 = tpu.matmul %88, %52, %cst_49 {dimension_numbers = #tpu.dot_dimension_numbers<[1], [1], [0], [0], [0, 0, 1, 0], [], []>} : vector<1x32xf32>, vector<32x32xf32>, vector<1x32xf32> -> vector<1x32xf32>
    %c1_50 = arith.constant 1 : index
    %c0_51 = arith.constant 0 : index
    %91 = vector.load %arg7[%c1_50, %c0_51] : memref<4x32xf32, #tpu.memory_space<vmem>>, vector<1x32xf32>
    tpu.vector_store %arg7[%c1_50, %c0_51], %89 {strides = array<i32>} : memref<4x32xf32, #tpu.memory_space<vmem>>, vector<1x32xf32>,
    %c3 = arith.constant 3 : index
    %c0_52 = arith.constant 0 : index
    %92 = vector.load %arg7[%c3, %c0_52] : memref<4x32xf32, #tpu.memory_space<vmem>>, vector<1x32xf32>
    tpu.vector_store %arg7[%c3, %c0_52], %90 {strides = array<i32>} : memref<4x32xf32, #tpu.memory_space<vmem>>, vector<1x32xf32>,
    return
  }
}

</mosaic_0001>

<llo_original>
// kernel: tpu_custom_call.1
$region0: #{tpu_custom_call.1}
  #allocation0 [shape = 'u32[]', space=smem, size = 0x4, offset = 0x4, fixed_abs, tag = 'smem constant byte address 0x4 - core index']
  #allocation1 [shape = 'u32[144,128]{1,0:T(1,128)}', space=vmem, size = 0x12000, scoped, tag = 'internal scratch']
  %s0 = inlined_call_operand.vmem [shape: f32[2,32,16], index: 0, kind: input, shape index: {}]
  %s1 = inlined_call_operand.vmem [shape: f32[2,32,32], index: 1, kind: input, shape index: {}]
  %s2 = inlined_call_operand.vmem [shape: f32[32,32], index: 2, kind: input, shape index: {}]
  %s3 = inlined_call_operand.vmem [shape: f32[16,32], index: 3, kind: input, shape index: {}]
  %s4 = inlined_call_operand.vmem [shape: f32[16,32], index: 4, kind: input, shape index: {}]
  %s5 = inlined_call_operand.vmem [shape: f32[16,1], index: 5, kind: input, shape index: {}]
  %s6 = inlined_call_operand.vmem [shape: f32[16,1], index: 6, kind: input, shape index: {}]
  %s7 = inlined_call_operand.hbm [shape: f32[4,32], index: 7, kind: output, shape index: {}]
  %s8 = sld [smem:[#allocation0]]
  $region38: #{tpu_custom_call.1} parent=0
    _
  %s10 = ssub.s32 1, %s8
  %s11 = scalar_select 0, %s10, %s8
  $region1: #{tpu_custom_call.1} parent=0
    #allocation2 [shape = 'u8[2048]{0}', space=vmem, size = 0x800, scoped, tag = 'output window, operand 0, single buffered']
    #allocation3 [shape = 's32[1]{0}', space=sflag, size = 0x4, scoped, tag = 'scoped memory for tpu_custom_call.1']
    %12 = vsyncpa [#allocation3], 0
    // Predicated region
    $region2: #{tpu_custom_call.1} parent=1 // pred_check
      _
    $region3: #{tpu_custom_call.1} parent=1 // pred_check_branch
      %14 = sbr.rel (0) target = $region5
    $region4: #{tpu_custom_call.1} parent=1 // pred_region
      _
    $region5: #{tpu_custom_call.1} parent=1 // pred_fallthru
      _
    // Predicated region
    $region6: #{tpu_custom_call.1} parent=1 // pred_check
      _
    $region7: #{tpu_custom_call.1} parent=1 // pred_check_branch
      %16 = sbr.rel (0) target = $region9
    $region8: #{tpu_custom_call.1} parent=1 // pred_region
      _
    $region9: #{tpu_custom_call.1} parent=1 // pred_fallthru
      _
    // Predicated region
    $region10: #{tpu_custom_call.1} parent=1 // pred_check
      _
    $region11: #{tpu_custom_call.1} parent=1 // pred_check_branch
      %18 = sbr.rel (0) target = $region13
    $region12: #{tpu_custom_call.1} parent=1 // pred_region
      _
    $region13: #{tpu_custom_call.1} parent=1 // pred_fallthru
      _
    // Predicated region
    $region14: #{tpu_custom_call.1} parent=1 // pred_check
      _
    $region15: #{tpu_custom_call.1} parent=1 // pred_check_branch
      %20 = sbr.rel (0) target = $region17
    $region16: #{tpu_custom_call.1} parent=1 // pred_region
      _
    $region17: #{tpu_custom_call.1} parent=1 // pred_fallthru
      _
    // Predicated region
    $region18: #{tpu_custom_call.1} parent=1 // pred_check
      _
    $region19: #{tpu_custom_call.1} parent=1 // pred_check_branch
      %22 = sbr.rel (0) target = $region21
    $region20: #{tpu_custom_call.1} parent=1 // pred_region
      _
    $region21: #{tpu_custom_call.1} parent=1 // pred_fallthru
      _
    // Predicated region
    $region22: #{tpu_custom_call.1} parent=1 // pred_check
      _
    $region23: #{tpu_custom_call.1} parent=1 // pred_check_branch
      %24 = sbr.rel (0) target = $region25
    $region24: #{tpu_custom_call.1} parent=1 // pred_region
      _
    $region25: #{tpu_custom_call.1} parent=1 // pred_fallthru
      _
    // Predicated region
    $region26: #{tpu_custom_call.1} parent=1 // pred_check
      _
    $region27: #{tpu_custom_call.1} parent=1 // pred_check_branch
      %26 = sbr.rel (0) target = $region29
    $region28: #{tpu_custom_call.1} parent=1 // pred_region
      _
    $region29: #{tpu_custom_call.1} parent=1 // pred_fallthru
      _
    %v27 = vld [vmem:[%s2] sm:$0xff]
    %v28 = vld [vmem:[%s2 + $0x8] sm:$0xff]
    %v29 = vld [vmem:[%s2 + $0x10] sm:$0xff]
    %v30 = vld [vmem:[%s2 + $0x18] sm:$0xff]
    %v31 = vld [vmem:[%s3] sm:$0xff]
    %v32 = vld [vmem:[%s3 + $0x8] sm:$0xff]
    %v33 = vld [vmem:[%s4] sm:$0xff]
    %v34 = vld [vmem:[%s4 + $0x8] sm:$0xff]
    %v35 = vld [vmem:[%s5] sm:$0xff]
    %v36 = vld [vmem:[%s5 + $0x8] sm:$0xff]
    %v37 = vld [vmem:[%s6] sm:$0xff]
    %v38 = vld [vmem:[%s6 + $0x8] sm:$0xff]
    %v39 = vld [vmem:[%s0] sm:$0xff]
    %v40 = vld [vmem:[%s0 + $0x8] sm:$0xff]
    %v41 = vld [vmem:[%s0 + $0x10] sm:$0xff]
    %v42 = vld [vmem:[%s0 + $0x18] sm:$0xff]
    %v43 = vld [vmem:[%s1] sm:$0xff]
    %v44 = vld [vmem:[%s1 + $0x8] sm:$0xff]
    %v45 = vld [vmem:[%s1 + $0x10] sm:$0xff]
    %v46 = vld [vmem:[%s1 + $0x18] sm:$0xff]
    %vm47 = vcmask 261120
    %v49 = vsel %vm47, %v27, 0
    %v52 = vsel %vm47, %v28, 0
    %v55 = vsel %vm47, %v29, 0
    %v58 = vsel %vm47, %v30, 0
    %60 = vmatprep.subr.mxu0 0.0
    %61 = vmatpush1.msra.mxu0 %v39
    %62 = vmatprep.subr.mxu0 0.0
    %63 = vmatpush1.msra.mxu0 %v40
    %64 = vmatprep.subr.mxu0 0.0
    %65 = vmatpush1.msra.mxu0 %v41
    %66 = vmatprep.subr.mxu0 0.0
    %67 = vmatpush1.msra.mxu0 %v42
    %68 = vmatprep.subr.mxu0 0.0
    %69 = vmatpush1.msra.mxu0 0.0
    %70 = vmatprep.subr.mxu0 0.0
    %71 = vmatpush1.msra.mxu0 0.0
    %72 = vmatprep.subr.mxu0 0.0
    %73 = vmatpush1.msra.mxu0 0.0
    %74 = vmatprep.subr.mxu0 0.0
    %75 = vmatpush1.msra.mxu0 0.0
    %76 = vmatprep.subr.mxu0 0.0
    %77 = vmatpush1.msra.mxu0 0.0
    %78 = vmatprep.subr.mxu0 0.0
    %79 = vmatpush1.msra.mxu0 0.0
    %80 = vmatprep.subr.mxu0 0.0
    %81 = vmatpush1.msra.mxu0 0.0
    %82 = vmatprep.subr.mxu0 0.0
    %83 = vmatpush1.msra.mxu0 0.0
    %84 = vmatprep.subr.mxu0 0.0
    %85 = vmatpush1.msra.mxu0 0.0
    %86 = vmatprep.subr.mxu0 0.0
    %87 = vmatpush1.msra.mxu0 0.0
    %88 = vmatprep.subr.mxu0 0.0
    %89 = vmatpush1.msra.mxu0 0.0
    %90 = vmatprep.subr.mxu0 0.0
    %91 = vmatpush1.msra.mxu0 0.0
    %92 = vmatprep.subr.mxu0 0.0
    %93 = vmatpush1.msra.mxu0 0.0
    %94 = vmatprep.subr.mxu0 0.0
    %95 = vmatpush1.msra.mxu0 0.0
    %96 = vmatprep.subr.mxu0 0.0
    %97 = vmatpush1.msra.mxu0 0.0
    %98 = vmatprep.subr.mxu0 0.0
    %99 = vmatpush1.msra.mxu0 0.0
    %100 = vmatprep.subr.mxu0 0.0
    %101 = vmatpush1.msra.mxu0 0.0
    %102 = vmatprep.subr.mxu0 0.0
    %103 = vmatpush1.msra.mxu0 0.0
    %104 = vmatprep.subr.mxu0 0.0
    %105 = vmatpush1.msra.mxu0 0.0
    %106 = vmatprep.subr.mxu0 0.0
    %107 = vmatpush1.msra.mxu0 0.0
    %108 = vmatprep.subr.mxu0 0.0
    %109 = vmatpush1.msra.mxu0 0.0
    %110 = vmatprep.subr.mxu0 0.0
    %111 = vmatpush1.msra.mxu0 0.0
    %112 = vmatprep.subr.mxu0 0.0
    %113 = vmatpush1.msra.mxu0 0.0
    %114 = vmatprep.subr.mxu0 0.0
    %115 = vmatpush1.msra.mxu0 0.0
    %116 = vmatprep.subr.mxu0 0.0
    %117 = vmatpush1.msra.mxu0 0.0
    %118 = vmatprep.subr.mxu0 0.0
    %119 = vmatpush1.msra.mxu0 0.0
    %120 = vmatprep.subr.mxu0 0.0
    %121 = vmatpush1.msra.mxu0 0.0
    %122 = vmatprep.subr.mxu0 0.0
    %123 = vmatpush1.msra.mxu0 0.0
    %124 = vmatprep.mubr.f32.mxu0 0.0
    %125 = vmatmul.mubr.f32.gmra.mrb[0].mxu0 %v49
    %v126 = vpop.f32.mrb[0].mxu0
    %v127 = vadd.f32 0.0, %v126
    %v128 = vpop.f32.mrb[0].mxu0
    %129 = vmatprep.mubr.f32.mxu0 0.0
    %130 = vmatmul.mubr.f32.gmra.mrb[0].mxu0 %v52
    %v131 = vpop.f32.mrb[0].mxu0
    %v132 = vadd.f32 0.0, %v131
    %v133 = vpop.f32.mrb[0].mxu0
    %134 = vmatprep.mubr.f32.mxu0 0.0
    %135 = vmatmul.mubr.f32.gmra.mrb[0].mxu0 %v55
    %v136 = vpop.f32.mrb[0].mxu0
    %v137 = vadd.f32 0.0, %v136
    %v138 = vpop.f32.mrb[0].mxu0
    %139 = vmatprep.mubr.f32.mxu0 0.0
    %140 = vmatmul.mubr.f32.gmra.mrb[0].mxu0 %v58
    %v141 = vpop.f32.mrb[0].mxu0
    %v142 = vadd.f32 0.0, %v141
    %v143 = vpop.f32.mrb[0].mxu0
    %144 = vdwg.mxu0
    %v146 = vsel %vm47, %v43, 0
    %v149 = vsel %vm47, %v44, 0
    %v152 = vsel %vm47, %v45, 0
    %v155 = vsel %vm47, %v46, 0
    %157 = vmatprep.subr.mxu0 0.0
    %158 = vmatpush1.msra.mxu0 %v127
    %159 = vmatprep.subr.mxu0 0.0
    %160 = vmatpush1.msra.mxu0 %v132
    %161 = vmatprep.subr.mxu0 0.0
    %162 = vmatpush1.msra.mxu0 %v137
    %163 = vmatprep.subr.mxu0 0.0
    %164 = vmatpush1.msra.mxu0 %v142
    %165 = vmatprep.subr.mxu0 0.0
    %166 = vmatpush1.msra.mxu0 0.0
    %167 = vmatprep.subr.mxu0 0.0
    %168 = vmatpush1.msra.mxu0 0.0
    %169 = vmatprep.subr.mxu0 0.0
    %170 = vmatpush1.msra.mxu0 0.0
    %171 = vmatprep.subr.mxu0 0.0
    %172 = vmatpush1.msra.mxu0 0.0
    %173 = vmatprep.subr.mxu0 0.0
    %174 = vmatpush1.msra.mxu0 0.0
    %175 = vmatprep.subr.mxu0 0.0
    %176 = vmatpush1.msra.mxu0 0.0
    %177 = vmatprep.subr.mxu0 0.0
    %178 = vmatpush1.msra.mxu0 0.0
    %179 = vmatprep.subr.mxu0 0.0
    %180 = vmatpush1.msra.mxu0 0.0
    %181 = vmatprep.subr.mxu0 0.0
    %182 = vmatpush1.msra.mxu0 0.0
    %183 = vmatprep.subr.mxu0 0.0
    %184 = vmatpush1.msra.mxu0 0.0
    %185 = vmatprep.subr.mxu0 0.0
    %186 = vmatpush1.msra.mxu0 0.0
    %187 = vmatprep.subr.mxu0 0.0
    %188 = vmatpush1.msra.mxu0 0.0
    %189 = vmatprep.subr.mxu0 0.0
    %190 = vmatpush1.msra.mxu0 0.0
    %191 = vmatprep.subr.mxu0 0.0
    %192 = vmatpush1.msra.mxu0 0.0
    %193 = vmatprep.subr.mxu0 0.0
    %194 = vmatpush1.msra.mxu0 0.0
    %195 = vmatprep.subr.mxu0 0.0
    %196 = vmatpush1.msra.mxu0 0.0
    %197 = vmatprep.subr.mxu0 0.0
    %198 = vmatpush1.msra.mxu0 0.0
    %199 = vmatprep.subr.mxu0 0.0
    %200 = vmatpush1.msra.mxu0 0.0
    %201 = vmatprep.subr.mxu0 0.0
    %202 = vmatpush1.msra.mxu0 0.0
    %203 = vmatprep.subr.mxu0 0.0
    %204 = vmatpush1.msra.mxu0 0.0
    %205 = vmatprep.subr.mxu0 0.0
    %206 = vmatpush1.msra.mxu0 0.0
    %207 = vmatprep.subr.mxu0 0.0
    %208 = vmatpush1.msra.mxu0 0.0
    %209 = vmatprep.subr.mxu0 0.0
    %210 = vmatpush1.msra.mxu0 0.0
    %211 = vmatprep.subr.mxu0 0.0
    %212 = vmatpush1.msra.mxu0 0.0
    %213 = vmatprep.subr.mxu0 0.0
    %214 = vmatpush1.msra.mxu0 0.0
    %215 = vmatprep.subr.mxu0 0.0
    %216 = vmatpush1.msra.mxu0 0.0
    %217 = vmatprep.subr.mxu0 0.0
    %218 = vmatpush1.msra.mxu0 0.0
    %219 = vmatprep.subr.mxu0 0.0
    %220 = vmatpush1.msra.mxu0 0.0
    %221 = vmatprep.mubr.f32.mxu0 0.0
    %222 = vmatmul.mubr.f32.gmra.mrb[0].mxu0 %v146
    %v223 = vpop.f32.mrb[0].mxu0
    %v224 = vadd.f32 0.0, %v223
    %v225 = vpop.f32.mrb[0].mxu0
    %226 = vmatprep.mubr.f32.mxu0 0.0
    %227 = vmatmul.mubr.f32.gmra.mrb[0].mxu0 %v149
    %v228 = vpop.f32.mrb[0].mxu0
    %v229 = vadd.f32 0.0, %v228
    %v230 = vpop.f32.mrb[0].mxu0
    %231 = vmatprep.mubr.f32.mxu0 0.0
    %232 = vmatmul.mubr.f32.gmra.mrb[0].mxu0 %v152
    %v233 = vpop.f32.mrb[0].mxu0
    %v234 = vadd.f32 0.0, %v233
    %v235 = vpop.f32.mrb[0].mxu0
    %236 = vmatprep.mubr.f32.mxu0 0.0
    %237 = vmatmul.mubr.f32.gmra.mrb[0].mxu0 %v155
    %v238 = vpop.f32.mrb[0].mxu0
    %v239 = vadd.f32 0.0, %v238
    %v240 = vpop.f32.mrb[0].mxu0
    %241 = vdwg.mxu0
    %v243 = vsel %vm47, %v31, 0
    %v246 = vsel %vm47, %v32, 0
    %248 = vmatprep.subr.mxu0 0.0
    %249 = vmatpush1.msra.mxu0 %v39
    %250 = vmatprep.subr.mxu0 0.0
    %251 = vmatpush1.msra.mxu0 %v40
    %252 = vmatprep.subr.mxu0 0.0
    %253 = vmatpush1.msra.mxu0 %v41
    %254 = vmatprep.subr.mxu0 0.0
    %255 = vmatpush1.msra.mxu0 %v42
    %256 = vmatprep.subr.mxu0 0.0
    %257 = vmatpush1.msra.mxu0 0.0
    %258 = vmatprep.subr.mxu0 0.0
    %259 = vmatpush1.msra.mxu0 0.0
    %260 = vmatprep.subr.mxu0 0.0
    %261 = vmatpush1.msra.mxu0 0.0
    %262 = vmatprep.subr.mxu0 0.0
    %263 = vmatpush1.msra.mxu0 0.0
    %264 = vmatprep.subr.mxu0 0.0
    %265 = vmatpush1.msra.mxu0 0.0
    %266 = vmatprep.subr.mxu0 0.0
    %267 = vmatpush1.msra.mxu0 0.0
    %268 = vmatprep.subr.mxu0 0.0
    %269 = vmatpush1.msra.mxu0 0.0
    %270 = vmatprep.subr.mxu0 0.0
    %271 = vmatpush1.msra.mxu0 0.0
    %272 = vmatprep.subr.mxu0 0.0
    %273 = vmatpush1.msra.mxu0 0.0
    %274 = vmatprep.subr.mxu0 0.0
    %275 = vmatpush1.msra.mxu0 0.0
    %276 = vmatprep.subr.mxu0 0.0
    %277 = vmatpush1.msra.mxu0 0.0
    %278 = vmatprep.subr.mxu0 0.0
    %279 = vmatpush1.msra.mxu0 0.0
    %280 = vmatprep.subr.mxu0 0.0
    %281 = vmatpush1.msra.mxu0 0.0
    %282 = vmatprep.subr.mxu0 0.0
    %283 = vmatpush1.msra.mxu0 0.0
    %284 = vmatprep.subr.mxu0 0.0
    %285 = vmatpush1.msra.mxu0 0.0
    %286 = vmatprep.subr.mxu0 0.0
    %287 = vmatpush1.msra.mxu0 0.0
    %288 = vmatprep.subr.mxu0 0.0
    %289 = vmatpush1.msra.mxu0 0.0
    %290 = vmatprep.subr.mxu0 0.0
    %291 = vmatpush1.msra.mxu0 0.0
    %292 = vmatprep.subr.mxu0 0.0
    %293 = vmatpush1.msra.mxu0 0.0
    %294 = vmatprep.subr.mxu0 0.0
    %295 = vmatpush1.msra.mxu0 0.0
    %296 = vmatprep.subr.mxu0 0.0
    %297 = vmatpush1.msra.mxu0 0.0
    %298 = vmatprep.subr.mxu0 0.0
    %299 = vmatpush1.msra.mxu0 0.0
    %300 = vmatprep.subr.mxu0 0.0
    %301 = vmatpush1.msra.mxu0 0.0
    %302 = vmatprep.subr.mxu0 0.0
    %303 = vmatpush1.msra.mxu0 0.0
    %304 = vmatprep.subr.mxu0 0.0
    %305 = vmatpush1.msra.mxu0 0.0
    %306 = vmatprep.subr.mxu0 0.0
    %307 = vmatpush1.msra.mxu0 0.0
    %308 = vmatprep.subr.mxu0 0.0
    %309 = vmatpush1.msra.mxu0 0.0
    %310 = vmatprep.subr.mxu0 0.0
    %311 = vmatpush1.msra.mxu0 0.0
    %312 = vmatprep.mubr.f32.mxu0 0.0
    %313 = vmatmul.mubr.f32.gmra.mrb[0].mxu0 %v243
    %v314 = vpop.f32.mrb[0].mxu0
    %v315 = vadd.f32 0.0, %v314
    %v316 = vpop.f32.mrb[0].mxu0
    %317 = vmatprep.mubr.f32.mxu0 0.0
    %318 = vmatmul.mubr.f32.gmra.mrb[0].mxu0 %v246
    %v319 = vpop.f32.mrb[0].mxu0
    %v320 = vadd.f32 0.0, %v319
    %v321 = vpop.f32.mrb[0].mxu0
    %322 = vdwg.mxu0
    %v324 = vsel %vm47, %v33, 0
    %v327 = vsel %vm47, %v34, 0
    %329 = vmatprep.subr.mxu0 0.0
    %330 = vmatpush1.xpose.msra.mxu0 %v146
    %331 = vmatprep.subr.mxu0 0.0
    %332 = vmatpush1.xpose.msra.mxu0 %v149
    %333 = vmatprep.subr.mxu0 0.0
    %334 = vmatpush1.xpose.msra.mxu0 %v152
    %335 = vmatprep.subr.mxu0 0.0
    %336 = vmatpush1.xpose.msra.mxu0 %v155
    %337 = vmatprep.subr.mxu0 0.0
    %338 = vmatpush1.xpose.msra.mxu0 0.0
    %339 = vmatprep.subr.mxu0 0.0
    %340 = vmatpush1.xpose.msra.mxu0 0.0
    %341 = vmatprep.subr.mxu0 0.0
    %342 = vmatpush1.xpose.msra.mxu0 0.0
    %343 = vmatprep.subr.mxu0 0.0
    %344 = vmatpush1.xpose.msra.mxu0 0.0
    %345 = vmatprep.subr.mxu0 0.0
    %346 = vmatpush1.xpose.msra.mxu0 0.0
    %347 = vmatprep.subr.mxu0 0.0
    %348 = vmatpush1.xpose.msra.mxu0 0.0
    %349 = vmatprep.subr.mxu0 0.0
    %350 = vmatpush1.xpose.msra.mxu0 0.0
    %351 = vmatprep.subr.mxu0 0.0
    %352 = vmatpush1.xpose.msra.mxu0 0.0
    %353 = vmatprep.subr.mxu0 0.0
    %354 = vmatpush1.xpose.msra.mxu0 0.0
    %355 = vmatprep.subr.mxu0 0.0
    %356 = vmatpush1.xpose.msra.mxu0 0.0
    %357 = vmatprep.subr.mxu0 0.0
    %358 = vmatpush1.xpose.msra.mxu0 0.0
    %359 = vmatprep.subr.mxu0 0.0
    %360 = vmatpush1.xpose.msra.mxu0 0.0
    %361 = vmatprep.subr.mxu0 0.0
    %362 = vmatpush1.xpose.msra.mxu0 0.0
    %363 = vmatprep.subr.mxu0 0.0
    %364 = vmatpush1.xpose.msra.mxu0 0.0
    %365 = vmatprep.subr.mxu0 0.0
    %366 = vmatpush1.xpose.msra.mxu0 0.0
    %367 = vmatprep.subr.mxu0 0.0
    %368 = vmatpush1.xpose.msra.mxu0 0.0
    %369 = vmatprep.subr.mxu0 0.0
    %370 = vmatpush1.xpose.msra.mxu0 0.0
    %371 = vmatprep.subr.mxu0 0.0
    %372 = vmatpush1.xpose.msra.mxu0 0.0
    %373 = vmatprep.subr.mxu0 0.0
    %374 = vmatpush1.xpose.msra.mxu0 0.0
    %375 = vmatprep.subr.mxu0 0.0
    %376 = vmatpush1.xpose.msra.mxu0 0.0
    %377 = vmatprep.subr.mxu0 0.0
    %378 = vmatpush1.xpose.msra.mxu0 0.0
    %379 = vmatprep.subr.mxu0 0.0
    %380 = vmatpush1.xpose.msra.mxu0 0.0
    %381 = vmatprep.subr.mxu0 0.0
    %382 = vmatpush1.xpose.msra.mxu0 0.0
    %383 = vmatprep.subr.mxu0 0.0
    %384 = vmatpush1.xpose.msra.mxu0 0.0
    %385 = vmatprep.subr.mxu0 0.0
    %386 = vmatpush1.xpose.msra.mxu0 0.0
    %387 = vmatprep.subr.mxu0 0.0
    %388 = vmatpush1.xpose.msra.mxu0 0.0
    %389 = vmatprep.subr.mxu0 0.0
    %390 = vmatpush1.xpose.msra.mxu0 0.0
    %391 = vmatprep.subr.mxu0 0.0
    %392 = vmatpush1.xpose.msra.mxu0 0.0
    %393 = vmatprep.mubr.f32.mxu0 0.0
    %394 = vmatmul.mubr.f32.gmra.mrb[0].mxu0 %v324
    %v395 = vpop.f32.mrb[0].mxu0
    %v396 = vadd.f32 0.0, %v395
    %v397 = vpop.f32.mrb[0].mxu0
    %398 = vmatprep.mubr.f32.mxu0 0.0
    %399 = vmatmul.mubr.f32.gmra.mrb[0].mxu0 %v327
    %v400 = vpop.f32.mrb[0].mxu0
    %v401 = vadd.f32 0.0, %v400
    %v402 = vpop.f32.mrb[0].mxu0
    %403 = vdwg.mxu0
    %v405 = vsel %vm47, %v396, 0
    %v408 = vsel %vm47, %v401, 0
    %410 = vmatprep.subr.mxu0 0.0
    %411 = vmatpush1.msra.mxu0 %v224
    %412 = vmatprep.subr.mxu0 0.0
    %413 = vmatpush1.msra.mxu0 %v229
    %414 = vmatprep.subr.mxu0 0.0
    %415 = vmatpush1.msra.mxu0 %v234
    %416 = vmatprep.subr.mxu0 0.0
    %417 = vmatpush1.msra.mxu0 %v239
    %418 = vmatprep.subr.mxu0 0.0
    %419 = vmatpush1.msra.mxu0 0.0
    %420 = vmatprep.subr.mxu0 0.0
    %421 = vmatpush1.msra.mxu0 0.0
    %422 = vmatprep.subr.mxu0 0.0
    %423 = vmatpush1.msra.mxu0 0.0
    %424 = vmatprep.subr.mxu0 0.0
    %425 = vmatpush1.msra.mxu0 0.0
    %426 = vmatprep.subr.mxu0 0.0
    %427 = vmatpush1.msra.mxu0 0.0
    %428 = vmatprep.subr.mxu0 0.0
    %429 = vmatpush1.msra.mxu0 0.0
    %430 = vmatprep.subr.mxu0 0.0
    %431 = vmatpush1.msra.mxu0 0.0
    %432 = vmatprep.subr.mxu0 0.0
    %433 = vmatpush1.msra.mxu0 0.0
    %434 = vmatprep.subr.mxu0 0.0
    %435 = vmatpush1.msra.mxu0 0.0
    %436 = vmatprep.subr.mxu0 0.0
    %437 = vmatpush1.msra.mxu0 0.0
    %438 = vmatprep.subr.mxu0 0.0
    %439 = vmatpush1.msra.mxu0 0.0
    %440 = vmatprep.subr.mxu0 0.0
    %441 = vmatpush1.msra.mxu0 0.0
    %442 = vmatprep.subr.mxu0 0.0
    %443 = vmatpush1.msra.mxu0 0.0
    %444 = vmatprep.subr.mxu0 0.0
    %445 = vmatpush1.msra.mxu0 0.0
    %446 = vmatprep.subr.mxu0 0.0
    %447 = vmatpush1.msra.mxu0 0.0
    %448 = vmatprep.subr.mxu0 0.0
    %449 = vmatpush1.msra.mxu0 0.0
    %450 = vmatprep.subr.mxu0 0.0
    %451 = vmatpush1.msra.mxu0 0.0
    %452 = vmatprep.subr.mxu0 0.0
    %453 = vmatpush1.msra.mxu0 0.0
    %454 = vmatprep.subr.mxu0 0.0
    %455 = vmatpush1.msra.mxu0 0.0
    %456 = vmatprep.subr.mxu0 0.0
    %457 = vmatpush1.msra.mxu0 0.0
    %458 = vmatprep.subr.mxu0 0.0
    %459 = vmatpush1.msra.mxu0 0.0
    %460 = vmatprep.subr.mxu0 0.0
    %461 = vmatpush1.msra.mxu0 0.0
    %462 = vmatprep.subr.mxu0 0.0
    %463 = vmatpush1.msra.mxu0 0.0
    %464 = vmatprep.subr.mxu0 0.0
    %465 = vmatpush1.msra.mxu0 0.0
    %466 = vmatprep.subr.mxu0 0.0
    %467 = vmatpush1.msra.mxu0 0.0
    %468 = vmatprep.subr.mxu0 0.0
    %469 = vmatpush1.msra.mxu0 0.0
    %470 = vmatprep.subr.mxu0 0.0
    %471 = vmatpush1.msra.mxu0 0.0
    %472 = vmatprep.subr.mxu0 0.0
    %473 = vmatpush1.msra.mxu0 0.0
    %474 = vmatprep.mubr.f32.mxu0 0.0
    %475 = vmatmul.mubr.f32.gmra.mrb[0].mxu0 %v405
    %v476 = vpop.f32.mrb[0].mxu0
    %v477 = vadd.f32 0.0, %v476
    %v478 = vpop.f32.mrb[0].mxu0
    %479 = vmatprep.mubr.f32.mxu0 0.0
    %480 = vmatmul.mubr.f32.gmra.mrb[0].mxu0 %v408
    %v481 = vpop.f32.mrb[0].mxu0
    %v482 = vadd.f32 0.0, %v481
    %v483 = vpop.f32.mrb[0].mxu0
    %484 = vdwg.mxu0
    %v485 = vadd.f32 %v315, %v477
    %v486 = vadd.f32 %v320, %v482
    %v487 = vtanh.pop %v485
    %v488 = vtanh.pop %v486
    %vm489 = vcmask 130048
    %v491 = vsel %vm489, %v315, 0
    %v494 = vsel %vm489, %v320, 0
    %v497 = vsel %vm489, %v224, 0
    %v500 = vsel %vm489, %v229, 0
    %v503 = vsel %vm489, %v234, 0
    %v506 = vsel %vm489, %v239, 0
    %508 = vmatprep.subr.mxu0 0.0
    %509 = vmatpush1.xpose.msra.mxu0 %v497
    %510 = vmatprep.subr.mxu0 0.0
    %511 = vmatpush1.xpose.msra.mxu0 %v500
    %512 = vmatprep.subr.mxu0 0.0
    %513 = vmatpush1.xpose.msra.mxu0 %v503
    %514 = vmatprep.subr.mxu0 0.0
    %515 = vmatpush1.xpose.msra.mxu0 %v506
    %516 = vmatprep.subr.mxu0 0.0
    %517 = vmatpush1.xpose.msra.mxu0 0.0
    %518 = vmatprep.subr.mxu0 0.0
    %519 = vmatpush1.xpose.msra.mxu0 0.0
    %520 = vmatprep.subr.mxu0 0.0
    %521 = vmatpush1.xpose.msra.mxu0 0.0
    %522 = vmatprep.subr.mxu0 0.0
    %523 = vmatpush1.xpose.msra.mxu0 0.0
    %524 = vmatprep.subr.mxu0 0.0
    %525 = vmatpush1.xpose.msra.mxu0 0.0
    %526 = vmatprep.subr.mxu0 0.0
    %527 = vmatpush1.xpose.msra.mxu0 0.0
    %528 = vmatprep.subr.mxu0 0.0
    %529 = vmatpush1.xpose.msra.mxu0 0.0
    %530 = vmatprep.subr.mxu0 0.0
    %531 = vmatpush1.xpose.msra.mxu0 0.0
    %532 = vmatprep.subr.mxu0 0.0
    %533 = vmatpush1.xpose.msra.mxu0 0.0
    %534 = vmatprep.subr.mxu0 0.0
    %535 = vmatpush1.xpose.msra.mxu0 0.0
    %536 = vmatprep.subr.mxu0 0.0
    %537 = vmatpush1.xpose.msra.mxu0 0.0
    %538 = vmatprep.subr.mxu0 0.0
    %539 = vmatpush1.xpose.msra.mxu0 0.0
    %540 = vmatprep.subr.mxu0 0.0
    %541 = vmatpush1.xpose.msra.mxu0 0.0
    %542 = vmatprep.subr.mxu0 0.0
    %543 = vmatpush1.xpose.msra.mxu0 0.0
    %544 = vmatprep.subr.mxu0 0.0
    %545 = vmatpush1.xpose.msra.mxu0 0.0
    %546 = vmatprep.subr.mxu0 0.0
    %547 = vmatpush1.xpose.msra.mxu0 0.0
    %548 = vmatprep.subr.mxu0 0.0
    %549 = vmatpush1.xpose.msra.mxu0 0.0
    %550 = vmatprep.subr.mxu0 0.0
    %551 = vmatpush1.xpose.msra.mxu0 0.0
    %552 = vmatprep.subr.mxu0 0.0
    %553 = vmatpush1.xpose.msra.mxu0 0.0
    %554 = vmatprep.subr.mxu0 0.0
    %555 = vmatpush1.xpose.msra.mxu0 0.0
    %556 = vmatprep.subr.mxu0 0.0
    %557 = vmatpush1.xpose.msra.mxu0 0.0
    %558 = vmatprep.subr.mxu0 0.0
    %559 = vmatpush1.xpose.msra.mxu0 0.0
    %560 = vmatprep.subr.mxu0 0.0
    %561 = vmatpush1.xpose.msra.mxu0 0.0
    %562 = vmatprep.subr.mxu0 0.0
    %563 = vmatpush1.xpose.msra.mxu0 0.0
    %564 = vmatprep.subr.mxu0 0.0
    %565 = vmatpush1.xpose.msra.mxu0 0.0
    %566 = vmatprep.subr.mxu0 0.0
    %567 = vmatpush1.xpose.msra.mxu0 0.0
    %568 = vmatprep.subr.mxu0 0.0
    %569 = vmatpush1.xpose.msra.mxu0 0.0
    %570 = vmatprep.subr.mxu0 0.0
    %571 = vmatpush1.xpose.msra.mxu0 0.0
    %572 = vmatprep.mubr.f32.mxu0 0.0
    %573 = vmatmul.mubr.f32.gmra.mrb[0].mxu0 %v491
    %v574 = vpop.f32.mrb[0].mxu0
    %v575 = vadd.f32 0.0, %v574
    %v576 = vpop.f32.mrb[0].mxu0
    %577 = vmatprep.mubr.f32.mxu0 0.0
    %578 = vmatmul.mubr.f32.gmra.mrb[0].mxu0 %v494
    %v579 = vpop.f32.mrb[0].mxu0
    %v580 = vadd.f32 0.0, %v579
    %v581 = vpop.f32.mrb[0].mxu0
    %582 = vdwg.mxu0
    %v583 = vadd.f32 %v396, %v575
    %v584 = vadd.f32 %v401, %v580
    %v585 = vtanh.pop %v583
    %v586 = vtanh.pop %v584
    %588 = vset.pattern.permute.xlu0 0
    %589 = vperm.xlu0 %588, %v35
    %v590 = vpop.permute.xlu0 %589
    %593 = vset.pattern.permute.xlu0 0
    %594 = vperm.xlu0 %593, %v36
    %v595 = vpop.permute.xlu0 %594
    %v597 = vmul.f32 %v590, %v487
    %v598 = vmul.f32 %v595, %v488
    %v599 = vsel %vm489, %v597, 0.0
    %v600 = vsel %vm489, %v598, 0.0
    %v601 = vadd.f32 %v599, %v600
    %v602 = vrot.slane %v601, 4
    %v603 = vadd.f32 %v601, %v602
    %v604 = vrot.slane %v603, 2
    %v605 = vadd.f32 %v603, %v604
    %v606 = vrot.slane %v605, 1
    %v607 = vadd.f32 %v605, %v606
    %609 = vset.pattern.permute.xlu0 0
    %610 = vperm.xlu0 %609, %v37
    %v611 = vpop.permute.xlu0 %610
    %614 = vset.pattern.permute.xlu0 0
    %615 = vperm.xlu0 %614, %v38
    %v616 = vpop.permute.xlu0 %615
    %v618 = vmul.f32 %v611, %v585
    %v619 = vmul.f32 %v616, %v586
    %v620 = vsel %vm47, %v618, 0.0
    %v621 = vsel %vm47, %v619, 0.0
    %v622 = vadd.f32 %v620, %v621
    %v623 = vrot.slane %v622, 4
    %v624 = vadd.f32 %v622, %v623
    %v625 = vrot.slane %v624, 2
    %v626 = vadd.f32 %v624, %v625
    %v627 = vrot.slane %v626, 1
    %v628 = vadd.f32 %v626, %v627
    %v629 = vsel %vm489, %v607, -inf
    %630 = vmax.xlane.f32.xlu0 %v629
    %v631 = vpop.xlane.xlu0 %630
    %v632 = vsub.f32 %v607, %v631
    %v633 = vmul.f32 %v632, 1.442695
    %v634 = vpow.pop %v633
    %v635 = vsel %vm489, %v634, 0.0
    %636 = vadd.xlane.f32.xlu0 %v635
    %v637 = vpop.xlane.xlu0 %636
    %v638 = vrcp.pop %v637
    %v639 = vmul.f32 %v634, %v638
    %v640 = vsel %vm47, %v628, -inf
    %641 = vmax.xlane.f32.xlu0 %v640
    %v642 = vpop.xlane.xlu0 %641
    %v643 = vsub.f32 %v628, %v642
    %v644 = vmul.f32 %v643, 1.442695
    %v645 = vpow.pop %v644
    %v646 = vsel %vm47, %v645, 0.0
    %647 = vadd.xlane.f32.xlu0 %v646
    %v648 = vpop.xlane.xlu0 %647
    %v649 = vrcp.pop %v648
    %v650 = vmul.f32 %v645, %v649
    %v652 = vsel %vm489, %v639, 0
    %v655 = vsel %vm489, %v39, 0
    %v658 = vsel %vm489, %v40, 0
    %v661 = vsel %vm489, %v41, 0
    %v664 = vsel %vm489, %v42, 0
    %666 = vmatprep.subr.mxu0 0.0
    %667 = vmatpush1.xpose.msra.mxu0 %v655
    %668 = vmatprep.subr.mxu0 0.0
    %669 = vmatpush1.xpose.msra.mxu0 %v658
    %670 = vmatprep.subr.mxu0 0.0
    %671 = vmatpush1.xpose.msra.mxu0 %v661
    %672 = vmatprep.subr.mxu0 0.0
    %673 = vmatpush1.xpose.msra.mxu0 %v664
    %674 = vmatprep.subr.mxu0 0.0
    %675 = vmatpush1.xpose.msra.mxu0 0.0
    %676 = vmatprep.subr.mxu0 0.0
    %677 = vmatpush1.xpose.msra.mxu0 0.0
    %678 = vmatprep.subr.mxu0 0.0
    %679 = vmatpush1.xpose.msra.mxu0 0.0
    %680 = vmatprep.subr.mxu0 0.0
    %681 = vmatpush1.xpose.msra.mxu0 0.0
    %682 = vmatprep.subr.mxu0 0.0
    %683 = vmatpush1.xpose.msra.mxu0 0.0
    %684 = vmatprep.subr.mxu0 0.0
    %685 = vmatpush1.xpose.msra.mxu0 0.0
    %686 = vmatprep.subr.mxu0 0.0
    %687 = vmatpush1.xpose.msra.mxu0 0.0
    %688 = vmatprep.subr.mxu0 0.0
    %689 = vmatpush1.xpose.msra.mxu0 0.0
    %690 = vmatprep.subr.mxu0 0.0
    %691 = vmatpush1.xpose.msra.mxu0 0.0
    %692 = vmatprep.subr.mxu0 0.0
    %693 = vmatpush1.xpose.msra.mxu0 0.0
    %694 = vmatprep.subr.mxu0 0.0
    %695 = vmatpush1.xpose.msra.mxu0 0.0
    %696 = vmatprep.subr.mxu0 0.0
    %697 = vmatpush1.xpose.msra.mxu0 0.0
    %698 = vmatprep.subr.mxu0 0.0
    %699 = vmatpush1.xpose.msra.mxu0 0.0
    %700 = vmatprep.subr.mxu0 0.0
    %701 = vmatpush1.xpose.msra.mxu0 0.0
    %702 = vmatprep.subr.mxu0 0.0
    %703 = vmatpush1.xpose.msra.mxu0 0.0
    %704 = vmatprep.subr.mxu0 0.0
    %705 = vmatpush1.xpose.msra.mxu0 0.0
    %706 = vmatprep.subr.mxu0 0.0
    %707 = vmatpush1.xpose.msra.mxu0 0.0
    %708 = vmatprep.subr.mxu0 0.0
    %709 = vmatpush1.xpose.msra.mxu0 0.0
    %710 = vmatprep.subr.mxu0 0.0
    %711 = vmatpush1.xpose.msra.mxu0 0.0
    %712 = vmatprep.subr.mxu0 0.0
    %713 = vmatpush1.xpose.msra.mxu0 0.0
    %714 = vmatprep.subr.mxu0 0.0
    %715 = vmatpush1.xpose.msra.mxu0 0.0
    %716 = vmatprep.subr.mxu0 0.0
    %717 = vmatpush1.xpose.msra.mxu0 0.0
    %718 = vmatprep.subr.mxu0 0.0
    %719 = vmatpush1.xpose.msra.mxu0 0.0
    %720 = vmatprep.subr.mxu0 0.0
    %721 = vmatpush1.xpose.msra.mxu0 0.0
    %722 = vmatprep.subr.mxu0 0.0
    %723 = vmatpush1.xpose.msra.mxu0 0.0
    %724 = vmatprep.subr.mxu0 0.0
    %725 = vmatpush1.xpose.msra.mxu0 0.0
    %726 = vmatprep.subr.mxu0 0.0
    %727 = vmatpush1.xpose.msra.mxu0 0.0
    %728 = vmatprep.subr.mxu0 0.0
    %729 = vmatpush1.xpose.msra.mxu0 0.0
    %730 = vmatprep.mubr.f32.mxu0 0.0
    %731 = vmatmul.mubr.f32.gmra.mrb[0].mxu0 %v652
    %v732 = vpop.f32.mrb[0].mxu0
    %v733 = vadd.f32 0.0, %v732
    %v734 = vpop.f32.mrb[0].mxu0
    %735 = vdwg.mxu0
    %v737 = vsel %vm47, %v650, 0
    %739 = vmatprep.subr.mxu0 0.0
    %740 = vmatpush1.xpose.msra.mxu0 %v146
    %741 = vmatprep.subr.mxu0 0.0
    %742 = vmatpush1.xpose.msra.mxu0 %v149
    %743 = vmatprep.subr.mxu0 0.0
    %744 = vmatpush1.xpose.msra.mxu0 %v152
    %745 = vmatprep.subr.mxu0 0.0
    %746 = vmatpush1.xpose.msra.mxu0 %v155
    %747 = vmatprep.subr.mxu0 0.0
    %748 = vmatpush1.xpose.msra.mxu0 0.0
    %749 = vmatprep.subr.mxu0 0.0
    %750 = vmatpush1.xpose.msra.mxu0 0.0
    %751 = vmatprep.subr.mxu0 0.0
    %752 = vmatpush1.xpose.msra.mxu0 0.0
    %753 = vmatprep.subr.mxu0 0.0
    %754 = vmatpush1.xpose.msra.mxu0 0.0
    %755 = vmatprep.subr.mxu0 0.0
    %756 = vmatpush1.xpose.msra.mxu0 0.0
    %757 = vmatprep.subr.mxu0 0.0
    %758 = vmatpush1.xpose.msra.mxu0 0.0
    %759 = vmatprep.subr.mxu0 0.0
    %760 = vmatpush1.xpose.msra.mxu0 0.0
    %761 = vmatprep.subr.mxu0 0.0
    %762 = vmatpush1.xpose.msra.mxu0 0.0
    %763 = vmatprep.subr.mxu0 0.0
    %764 = vmatpush1.xpose.msra.mxu0 0.0
    %765 = vmatprep.subr.mxu0 0.0
    %766 = vmatpush1.xpose.msra.mxu0 0.0
    %767 = vmatprep.subr.mxu0 0.0
    %768 = vmatpush1.xpose.msra.mxu0 0.0
    %769 = vmatprep.subr.mxu0 0.0
    %770 = vmatpush1.xpose.msra.mxu0 0.0
    %771 = vmatprep.subr.mxu0 0.0
    %772 = vmatpush1.xpose.msra.mxu0 0.0
    %773 = vmatprep.subr.mxu0 0.0
    %774 = vmatpush1.xpose.msra.mxu0 0.0
    %775 = vmatprep.subr.mxu0 0.0
    %776 = vmatpush1.xpose.msra.mxu0 0.0
    %777 = vmatprep.subr.mxu0 0.0
    %778 = vmatpush1.xpose.msra.mxu0 0.0
    %779 = vmatprep.subr.mxu0 0.0
    %780 = vmatpush1.xpose.msra.mxu0 0.0
    %781 = vmatprep.subr.mxu0 0.0
    %782 = vmatpush1.xpose.msra.mxu0 0.0
    %783 = vmatprep.subr.mxu0 0.0
    %784 = vmatpush1.xpose.msra.mxu0 0.0
    %785 = vmatprep.subr.mxu0 0.0
    %786 = vmatpush1.xpose.msra.mxu0 0.0
    %787 = vmatprep.subr.mxu0 0.0
    %788 = vmatpush1.xpose.msra.mxu0 0.0
    %789 = vmatprep.subr.mxu0 0.0
    %790 = vmatpush1.xpose.msra.mxu0 0.0
    %791 = vmatprep.subr.mxu0 0.0
    %792 = vmatpush1.xpose.msra.mxu0 0.0
    %793 = vmatprep.subr.mxu0 0.0
    %794 = vmatpush1.xpose.msra.mxu0 0.0
    %795 = vmatprep.subr.mxu0 0.0
    %796 = vmatpush1.xpose.msra.mxu0 0.0
    %797 = vmatprep.subr.mxu0 0.0
    %798 = vmatpush1.xpose.msra.mxu0 0.0
    %799 = vmatprep.subr.mxu0 0.0
    %800 = vmatpush1.xpose.msra.mxu0 0.0
    %801 = vmatprep.subr.mxu0 0.0
    %802 = vmatpush1.xpose.msra.mxu0 0.0
    %803 = vmatprep.mubr.f32.mxu0 0.0
    %804 = vmatmul.mubr.f32.gmra.mrb[0].mxu0 %v737
    %v805 = vpop.f32.mrb[0].mxu0
    %v806 = vadd.f32 0.0, %v805
    %v807 = vpop.f32.mrb[0].mxu0
    %808 = vdwg.mxu0
    %vm809 = vcmask 253952
    %810 = vst.msk [vmem:[#allocation2] sm:$0x1] %vm809, %v733
    %811 = vst.msk [vmem:[#allocation2 + $0x2] sm:$0x1] %vm809, %v806
    %s812 = scalar_lea.vmem %s0, 32
    %v813 = vld [vmem:[%s812] sm:$0xff]
    %v814 = vld [vmem:[%s812 + $0x8] sm:$0xff]
    %v815 = vld [vmem:[%s812 + $0x10] sm:$0xff]
    %v816 = vld [vmem:[%s812 + $0x18] sm:$0xff]
    %s817 = scalar_lea.vmem %s1, 32
    %v818 = vld [vmem:[%s817] sm:$0xff]
    %v819 = vld [vmem:[%s817 + $0x8] sm:$0xff]
    %v820 = vld [vmem:[%s817 + $0x10] sm:$0xff]
    %v821 = vld [vmem:[%s817 + $0x18] sm:$0xff]
    %822 = vmatprep.subr.mxu0 0.0
    %823 = vmatpush1.msra.mxu0 %v813
    %824 = vmatprep.subr.mxu0 0.0
    %825 = vmatpush1.msra.mxu0 %v814
    %826 = vmatprep.subr.mxu0 0.0
    %827 = vmatpush1.msra.mxu0 %v815
    %828 = vmatprep.subr.mxu0 0.0
    %829 = vmatpush1.msra.mxu0 %v816
    %830 = vmatprep.subr.mxu0 0.0
    %831 = vmatpush1.msra.mxu0 0.0
    %832 = vmatprep.subr.mxu0 0.0
    %833 = vmatpush1.msra.mxu0 0.0
    %834 = vmatprep.subr.mxu0 0.0
    %835 = vmatpush1.msra.mxu0 0.0
    %836 = vmatprep.subr.mxu0 0.0
    %837 = vmatpush1.msra.mxu0 0.0
    %838 = vmatprep.subr.mxu0 0.0
    %839 = vmatpush1.msra.mxu0 0.0
    %840 = vmatprep.subr.mxu0 0.0
    %841 = vmatpush1.msra.mxu0 0.0
    %842 = vmatprep.subr.mxu0 0.0
    %843 = vmatpush1.msra.mxu0 0.0
    %844 = vmatprep.subr.mxu0 0.0
    %845 = vmatpush1.msra.mxu0 0.0
    %846 = vmatprep.subr.mxu0 0.0
    %847 = vmatpush1.msra.mxu0 0.0
    %848 = vmatprep.subr.mxu0 0.0
    %849 = vmatpush1.msra.mxu0 0.0
    %850 = vmatprep.subr.mxu0 0.0
    %851 = vmatpush1.msra.mxu0 0.0
    %852 = vmatprep.subr.mxu0 0.0
    %853 = vmatpush1.msra.mxu0 0.0
    %854 = vmatprep.subr.mxu0 0.0
    %855 = vmatpush1.msra.mxu0 0.0
    %856 = vmatprep.subr.mxu0 0.0
    %857 = vmatpush1.msra.mxu0 0.0
    %858 = vmatprep.subr.mxu0 0.0
    %859 = vmatpush1.msra.mxu0 0.0
    %860 = vmatprep.subr.mxu0 0.0
    %861 = vmatpush1.msra.mxu0 0.0
    %862 = vmatprep.subr.mxu0 0.0
    %863 = vmatpush1.msra.mxu0 0.0
    %864 = vmatprep.subr.mxu0 0.0
    %865 = vmatpush1.msra.mxu0 0.0
    %866 = vmatprep.subr.mxu0 0.0
    %867 = vmatpush1.msra.mxu0 0.0
    %868 = vmatprep.subr.mxu0 0.0
    %869 = vmatpush1.msra.mxu0 0.0
    %870 = vmatprep.subr.mxu0 0.0
    %871 = vmatpush1.msra.mxu0 0.0
    %872 = vmatprep.subr.mxu0 0.0
    %873 = vmatpush1.msra.mxu0 0.0
    %874 = vmatprep.subr.mxu0 0.0
    %875 = vmatpush1.msra.mxu0 0.0
    %876 = vmatprep.subr.mxu0 0.0
    %877 = vmatpush1.msra.mxu0 0.0
    %878 = vmatprep.subr.mxu0 0.0
    %879 = vmatpush1.msra.mxu0 0.0
    %880 = vmatprep.subr.mxu0 0.0
    %881 = vmatpush1.msra.mxu0 0.0
    %882 = vmatprep.subr.mxu0 0.0
    %883 = vmatpush1.msra.mxu0 0.0
    %884 = vmatprep.subr.mxu0 0.0
    %885 = vmatpush1.msra.mxu0 0.0
    %886 = vmatprep.mubr.f32.mxu0 0.0
    %887 = vmatmul.mubr.f32.gmra.mrb[0].mxu0 %v49
    %v888 = vpop.f32.mrb[0].mxu0
    %v889 = vadd.f32 0.0, %v888
    %v890 = vpop.f32.mrb[0].mxu0
    %891 = vmatprep.mubr.f32.mxu0 0.0
    %892 = vmatmul.mubr.f32.gmra.mrb[0].mxu0 %v52
    %v893 = vpop.f32.mrb[0].mxu0
    %v894 = vadd.f32 0.0, %v893
    %v895 = vpop.f32.mrb[0].mxu0
    %896 = vmatprep.mubr.f32.mxu0 0.0
    %897 = vmatmul.mubr.f32.gmra.mrb[0].mxu0 %v55
    %v898 = vpop.f32.mrb[0].mxu0
    %v899 = vadd.f32 0.0, %v898
    %v900 = vpop.f32.mrb[0].mxu0
    %901 = vmatprep.mubr.f32.mxu0 0.0
    %902 = vmatmul.mubr.f32.gmra.mrb[0].mxu0 %v58
    %v903 = vpop.f32.mrb[0].mxu0
    %v904 = vadd.f32 0.0, %v903
    %v905 = vpop.f32.mrb[0].mxu0
    %906 = vdwg.mxu0
    %v908 = vsel %vm47, %v818, 0
    %v911 = vsel %vm47, %v819, 0
    %v914 = vsel %vm47, %v820, 0
    %v917 = vsel %vm47, %v821, 0
    %919 = vmatprep.subr.mxu0 0.0
    %920 = vmatpush1.msra.mxu0 %v889
    %921 = vmatprep.subr.mxu0 0.0
    %922 = vmatpush1.msra.mxu0 %v894
    %923 = vmatprep.subr.mxu0 0.0
    %924 = vmatpush1.msra.mxu0 %v899
    %925 = vmatprep.subr.mxu0 0.0
    %926 = vmatpush1.msra.mxu0 %v904
    %927 = vmatprep.subr.mxu0 0.0
    %928 = vmatpush1.msra.mxu0 0.0
    %929 = vmatprep.subr.mxu0 0.0
    %930 = vmatpush1.msra.mxu0 0.0
    %931 = vmatprep.subr.mxu0 0.0
    %932 = vmatpush1.msra.mxu0 0.0
    %933 = vmatprep.subr.mxu0 0.0
    %934 = vmatpush1.msra.mxu0 0.0
    %935 = vmatprep.subr.mxu0 0.0
    %936 = vmatpush1.msra.mxu0 0.0
    %937 = vmatprep.subr.mxu0 0.0
    %938 = vmatpush1.msra.mxu0 0.0
    %939 = vmatprep.subr.mxu0 0.0
    %940 = vmatpush1.msra.mxu0 0.0
    %941 = vmatprep.subr.mxu0 0.0
    %942 = vmatpush1.msra.mxu0 0.0
    %943 = vmatprep.subr.mxu0 0.0
    %944 = vmatpush1.msra.mxu0 0.0
    %945 = vmatprep.subr.mxu0 0.0
    %946 = vmatpush1.msra.mxu0 0.0
    %947 = vmatprep.subr.mxu0 0.0
    %948 = vmatpush1.msra.mxu0 0.0
    %949 = vmatprep.subr.mxu0 0.0
    %950 = vmatpush1.msra.mxu0 0.0
    %951 = vmatprep.subr.mxu0 0.0
    %952 = vmatpush1.msra.mxu0 0.0
    %953 = vmatprep.subr.mxu0 0.0
    %954 = vmatpush1.msra.mxu0 0.0
    %955 = vmatprep.subr.mxu0 0.0
    %956 = vmatpush1.msra.mxu0 0.0
    %957 = vmatprep.subr.mxu0 0.0
    %958 = vmatpush1.msra.mxu0 0.0
    %959 = vmatprep.subr.mxu0 0.0
    %960 = vmatpush1.msra.mxu0 0.0
    %961 = vmatprep.subr.mxu0 0.0
    %962 = vmatpush1.msra.mxu0 0.0
    %963 = vmatprep.subr.mxu0 0.0
    %964 = vmatpush1.msra.mxu0 0.0
    %965 = vmatprep.subr.mxu0 0.0
    %966 = vmatpush1.msra.mxu0 0.0
    %967 = vmatprep.subr.mxu0 0.0
    %968 = vmatpush1.msra.mxu0 0.0
    %969 = vmatprep.subr.mxu0 0.0
    %970 = vmatpush1.msra.mxu0 0.0
    %971 = vmatprep.subr.mxu0 0.0
    %972 = vmatpush1.msra.mxu0 0.0
    %973 = vmatprep.subr.mxu0 0.0
    %974 = vmatpush1.msra.mxu0 0.0
    %975 = vmatprep.subr.mxu0 0.0
    %976 = vmatpush1.msra.mxu0 0.0
    %977 = vmatprep.subr.mxu0 0.0
    %978 = vmatpush1.msra.mxu0 0.0
    %979 = vmatprep.subr.mxu0 0.0
    %980 = vmatpush1.msra.mxu0 0.0
    %981 = vmatprep.subr.mxu0 0.0
    %982 = vmatpush1.msra.mxu0 0.0
    %983 = vmatprep.mubr.f32.mxu0 0.0
    %984 = vmatmul.mubr.f32.gmra.mrb[0].mxu0 %v908
    %v985 = vpop.f32.mrb[0].mxu0
    %v986 = vadd.f32 0.0, %v985
    %v987 = vpop.f32.mrb[0].mxu0
    %988 = vmatprep.mubr.f32.mxu0 0.0
    %989 = vmatmul.mubr.f32.gmra.mrb[0].mxu0 %v911
    %v990 = vpop.f32.mrb[0].mxu0
    %v991 = vadd.f32 0.0, %v990
    %v992 = vpop.f32.mrb[0].mxu0
    %993 = vmatprep.mubr.f32.mxu0 0.0
    %994 = vmatmul.mubr.f32.gmra.mrb[0].mxu0 %v914
    %v995 = vpop.f32.mrb[0].mxu0
    %v996 = vadd.f32 0.0, %v995
    %v997 = vpop.f32.mrb[0].mxu0
    %998 = vmatprep.mubr.f32.mxu0 0.0
    %999 = vmatmul.mubr.f32.gmra.mrb[0].mxu0 %v917
    %v1000 = vpop.f32.mrb[0].mxu0
    %v1001 = vadd.f32 0.0, %v1000
    %v1002 = vpop.f32.mrb[0].mxu0
    %1003 = vdwg.mxu0
    %1004 = vmatprep.subr.mxu0 0.0
    %1005 = vmatpush1.msra.mxu0 %v813
    %1006 = vmatprep.subr.mxu0 0.0
    %1007 = vmatpush1.msra.mxu0 %v814
    %1008 = vmatprep.subr.mxu0 0.0
    %1009 = vmatpush1.msra.mxu0 %v815
    %1010 = vmatprep.subr.mxu0 0.0
    %1011 = vmatpush1.msra.mxu0 %v816
    %1012 = vmatprep.subr.mxu0 0.0
    %1013 = vmatpush1.msra.mxu0 0.0
    %1014 = vmatprep.subr.mxu0 0.0
    %1015 = vmatpush1.msra.mxu0 0.0
    %1016 = vmatprep.subr.mxu0 0.0
    %1017 = vmatpush1.msra.mxu0 0.0
    %1018 = vmatprep.subr.mxu0 0.0
    %1019 = vmatpush1.msra.mxu0 0.0
    %1020 = vmatprep.subr.mxu0 0.0
    %1021 = vmatpush1.msra.mxu0 0.0
    %1022 = vmatprep.subr.mxu0 0.0
    %1023 = vmatpush1.msra.mxu0 0.0
    %1024 = vmatprep.subr.mxu0 0.0
    %1025 = vmatpush1.msra.mxu0 0.0
    %1026 = vmatprep.subr.mxu0 0.0
    %1027 = vmatpush1.msra.mxu0 0.0
    %1028 = vmatprep.subr.mxu0 0.0
    %1029 = vmatpush1.msra.mxu0 0.0
    %1030 = vmatprep.subr.mxu0 0.0
    %1031 = vmatpush1.msra.mxu0 0.0
    %1032 = vmatprep.subr.mxu0 0.0
    %1033 = vmatpush1.msra.mxu0 0.0
    %1034 = vmatprep.subr.mxu0 0.0
    %1035 = vmatpush1.msra.mxu0 0.0
    %1036 = vmatprep.subr.mxu0 0.0
    %1037 = vmatpush1.msra.mxu0 0.0
    %1038 = vmatprep.subr.mxu0 0.0
    %1039 = vmatpush1.msra.mxu0 0.0
    %1040 = vmatprep.subr.mxu0 0.0
    %1041 = vmatpush1.msra.mxu0 0.0
    %1042 = vmatprep.subr.mxu0 0.0
    %1043 = vmatpush1.msra.mxu0 0.0
    %1044 = vmatprep.subr.mxu0 0.0
    %1045 = vmatpush1.msra.mxu0 0.0
    %1046 = vmatprep.subr.mxu0 0.0
    %1047 = vmatpush1.msra.mxu0 0.0
    %1048 = vmatprep.subr.mxu0 0.0
    %1049 = vmatpush1.msra.mxu0 0.0
    %1050 = vmatprep.subr.mxu0 0.0
    %1051 = vmatpush1.msra.mxu0 0.0
    %1052 = vmatprep.subr.mxu0 0.0
    %1053 = vmatpush1.msra.mxu0 0.0
    %1054 = vmatprep.subr.mxu0 0.0
    %1055 = vmatpush1.msra.mxu0 0.0
    %1056 = vmatprep.subr.mxu0 0.0
    %1057 = vmatpush1.msra.mxu0 0.0
    %1058 = vmatprep.subr.mxu0 0.0
    %1059 = vmatpush1.msra.mxu0 0.0
    %1060 = vmatprep.subr.mxu0 0.0
    %1061 = vmatpush1.msra.mxu0 0.0
    %1062 = vmatprep.subr.mxu0 0.0
    %1063 = vmatpush1.msra.mxu0 0.0
    %1064 = vmatprep.subr.mxu0 0.0
    %1065 = vmatpush1.msra.mxu0 0.0
    %1066 = vmatprep.subr.mxu0 0.0
    %1067 = vmatpush1.msra.mxu0 0.0
    %1068 = vmatprep.mubr.f32.mxu0 0.0
    %1069 = vmatmul.mubr.f32.gmra.mrb[0].mxu0 %v243
    %v1070 = vpop.f32.mrb[0].mxu0
    %v1071 = vadd.f32 0.0, %v1070
    %v1072 = vpop.f32.mrb[0].mxu0
    %1073 = vmatprep.mubr.f32.mxu0 0.0
    %1074 = vmatmul.mubr.f32.gmra.mrb[0].mxu0 %v246
    %v1075 = vpop.f32.mrb[0].mxu0
    %v1076 = vadd.f32 0.0, %v1075
    %v1077 = vpop.f32.mrb[0].mxu0
    %1078 = vdwg.mxu0
    %1079 = vmatprep.subr.mxu0 0.0
    %1080 = vmatpush1.xpose.msra.mxu0 %v908
    %1081 = vmatprep.subr.mxu0 0.0
    %1082 = vmatpush1.xpose.msra.mxu0 %v911
    %1083 = vmatprep.subr.mxu0 0.0
    %1084 = vmatpush1.xpose.msra.mxu0 %v914
    %1085 = vmatprep.subr.mxu0 0.0
    %1086 = vmatpush1.xpose.msra.mxu0 %v917
    %1087 = vmatprep.subr.mxu0 0.0
    %1088 = vmatpush1.xpose.msra.mxu0 0.0
    %1089 = vmatprep.subr.mxu0 0.0
    %1090 = vmatpush1.xpose.msra.mxu0 0.0
    %1091 = vmatprep.subr.mxu0 0.0
    %1092 = vmatpush1.xpose.msra.mxu0 0.0
    %1093 = vmatprep.subr.mxu0 0.0
    %1094 = vmatpush1.xpose.msra.mxu0 0.0
    %1095 = vmatprep.subr.mxu0 0.0
    %1096 = vmatpush1.xpose.msra.mxu0 0.0
    %1097 = vmatprep.subr.mxu0 0.0
    %1098 = vmatpush1.xpose.msra.mxu0 0.0
    %1099 = vmatprep.subr.mxu0 0.0
    %1100 = vmatpush1.xpose.msra.mxu0 0.0
    %1101 = vmatprep.subr.mxu0 0.0
    %1102 = vmatpush1.xpose.msra.mxu0 0.0
    %1103 = vmatprep.subr.mxu0 0.0
    %1104 = vmatpush1.xpose.msra.mxu0 0.0
    %1105 = vmatprep.subr.mxu0 0.0
    %1106 = vmatpush1.xpose.msra.mxu0 0.0
    %1107 = vmatprep.subr.mxu0 0.0
    %1108 = vmatpush1.xpose.msra.mxu0 0.0
    %1109 = vmatprep.subr.mxu0 0.0
    %1110 = vmatpush1.xpose.msra.mxu0 0.0
    %1111 = vmatprep.subr.mxu0 0.0
    %1112 = vmatpush1.xpose.msra.mxu0 0.0
    %1113 = vmatprep.subr.mxu0 0.0
    %1114 = vmatpush1.xpose.msra.mxu0 0.0
    %1115 = vmatprep.subr.mxu0 0.0
    %1116 = vmatpush1.xpose.msra.mxu0 0.0
    %1117 = vmatprep.subr.mxu0 0.0
    %1118 = vmatpush1.xpose.msra.mxu0 0.0
    %1119 = vmatprep.subr.mxu0 0.0
    %1120 = vmatpush1.xpose.msra.mxu0 0.0
    %1121 = vmatprep.subr.mxu0 0.0
    %1122 = vmatpush1.xpose.msra.mxu0 0.0
    %1123 = vmatprep.subr.mxu0 0.0
    %1124 = vmatpush1.xpose.msra.mxu0 0.0
    %1125 = vmatprep.subr.mxu0 0.0
    %1126 = vmatpush1.xpose.msra.mxu0 0.0
    %1127 = vmatprep.subr.mxu0 0.0
    %1128 = vmatpush1.xpose.msra.mxu0 0.0
    %1129 = vmatprep.subr.mxu0 0.0
    %1130 = vmatpush1.xpose.msra.mxu0 0.0
    %1131 = vmatprep.subr.mxu0 0.0
    %1132 = vmatpush1.xpose.msra.mxu0 0.0
    %1133 = vmatprep.subr.mxu0 0.0
    %1134 = vmatpush1.xpose.msra.mxu0 0.0
    %1135 = vmatprep.subr.mxu0 0.0
    %1136 = vmatpush1.xpose.msra.mxu0 0.0
    %1137 = vmatprep.subr.mxu0 0.0
    %1138 = vmatpush1.xpose.msra.mxu0 0.0
    %1139 = vmatprep.subr.mxu0 0.0
    %1140 = vmatpush1.xpose.msra.mxu0 0.0
    %1141 = vmatprep.subr.mxu0 0.0
    %1142 = vmatpush1.xpose.msra.mxu0 0.0
    %1143 = vmatprep.mubr.f32.mxu0 0.0
    %1144 = vmatmul.mubr.f32.gmra.mrb[0].mxu0 %v324
    %v1145 = vpop.f32.mrb[0].mxu0
    %v1146 = vadd.f32 0.0, %v1145
    %v1147 = vpop.f32.mrb[0].mxu0
    %1148 = vmatprep.mubr.f32.mxu0 0.0
    %1149 = vmatmul.mubr.f32.gmra.mrb[0].mxu0 %v327
    %v1150 = vpop.f32.mrb[0].mxu0
    %v1151 = vadd.f32 0.0, %v1150
    %v1152 = vpop.f32.mrb[0].mxu0
    %1153 = vdwg.mxu0
    %v1155 = vsel %vm47, %v1146, 0
    %v1158 = vsel %vm47, %v1151, 0
    %1160 = vmatprep.subr.mxu0 0.0
    %1161 = vmatpush1.msra.mxu0 %v986
    %1162 = vmatprep.subr.mxu0 0.0
    %1163 = vmatpush1.msra.mxu0 %v991
    %1164 = vmatprep.subr.mxu0 0.0
    %1165 = vmatpush1.msra.mxu0 %v996
    %1166 = vmatprep.subr.mxu0 0.0
    %1167 = vmatpush1.msra.mxu0 %v1001
    %1168 = vmatprep.subr.mxu0 0.0
    %1169 = vmatpush1.msra.mxu0 0.0
    %1170 = vmatprep.subr.mxu0 0.0
    %1171 = vmatpush1.msra.mxu0 0.0
    %1172 = vmatprep.subr.mxu0 0.0
    %1173 = vmatpush1.msra.mxu0 0.0
    %1174 = vmatprep.subr.mxu0 0.0
    %1175 = vmatpush1.msra.mxu0 0.0
    %1176 = vmatprep.subr.mxu0 0.0
    %1177 = vmatpush1.msra.mxu0 0.0
    %1178 = vmatprep.subr.mxu0 0.0
    %1179 = vmatpush1.msra.mxu0 0.0
    %1180 = vmatprep.subr.mxu0 0.0
    %1181 = vmatpush1.msra.mxu0 0.0
    %1182 = vmatprep.subr.mxu0 0.0
    %1183 = vmatpush1.msra.mxu0 0.0
    %1184 = vmatprep.subr.mxu0 0.0
    %1185 = vmatpush1.msra.mxu0 0.0
    %1186 = vmatprep.subr.mxu0 0.0
    %1187 = vmatpush1.msra.mxu0 0.0
    %1188 = vmatprep.subr.mxu0 0.0
    %1189 = vmatpush1.msra.mxu0 0.0
    %1190 = vmatprep.subr.mxu0 0.0
    %1191 = vmatpush1.msra.mxu0 0.0
    %1192 = vmatprep.subr.mxu0 0.0
    %1193 = vmatpush1.msra.mxu0 0.0
    %1194 = vmatprep.subr.mxu0 0.0
    %1195 = vmatpush1.msra.mxu0 0.0
    %1196 = vmatprep.subr.mxu0 0.0
    %1197 = vmatpush1.msra.mxu0 0.0
    %1198 = vmatprep.subr.mxu0 0.0
    %1199 = vmatpush1.msra.mxu0 0.0
    %1200 = vmatprep.subr.mxu0 0.0
    %1201 = vmatpush1.msra.mxu0 0.0
    %1202 = vmatprep.subr.mxu0 0.0
    %1203 = vmatpush1.msra.mxu0 0.0
    %1204 = vmatprep.subr.mxu0 0.0
    %1205 = vmatpush1.msra.mxu0 0.0
    %1206 = vmatprep.subr.mxu0 0.0
    %1207 = vmatpush1.msra.mxu0 0.0
    %1208 = vmatprep.subr.mxu0 0.0
    %1209 = vmatpush1.msra.mxu0 0.0
    %1210 = vmatprep.subr.mxu0 0.0
    %1211 = vmatpush1.msra.mxu0 0.0
    %1212 = vmatprep.subr.mxu0 0.0
    %1213 = vmatpush1.msra.mxu0 0.0
    %1214 = vmatprep.subr.mxu0 0.0
    %1215 = vmatpush1.msra.mxu0 0.0
    %1216 = vmatprep.subr.mxu0 0.0
    %1217 = vmatpush1.msra.mxu0 0.0
    %1218 = vmatprep.subr.mxu0 0.0
    %1219 = vmatpush1.msra.mxu0 0.0
    %1220 = vmatprep.subr.mxu0 0.0
    %1221 = vmatpush1.msra.mxu0 0.0
    %1222 = vmatprep.subr.mxu0 0.0
    %1223 = vmatpush1.msra.mxu0 0.0
    %1224 = vmatprep.mubr.f32.mxu0 0.0
    %1225 = vmatmul.mubr.f32.gmra.mrb[0].mxu0 %v1155
    %v1226 = vpop.f32.mrb[0].mxu0
    %v1227 = vadd.f32 0.0, %v1226
    %v1228 = vpop.f32.mrb[0].mxu0
    %1229 = vmatprep.mubr.f32.mxu0 0.0
    %1230 = vmatmul.mubr.f32.gmra.mrb[0].mxu0 %v1158
    %v1231 = vpop.f32.mrb[0].mxu0
    %v1232 = vadd.f32 0.0, %v1231
    %v1233 = vpop.f32.mrb[0].mxu0
    %1234 = vdwg.mxu0
    %v1235 = vadd.f32 %v1071, %v1227
    %v1236 = vadd.f32 %v1076, %v1232
    %v1237 = vtanh.pop %v1235
    %v1238 = vtanh.pop %v1236
    %v1240 = vsel %vm489, %v1071, 0
    %v1243 = vsel %vm489, %v1076, 0
    %v1246 = vsel %vm489, %v986, 0
    %v1249 = vsel %vm489, %v991, 0
    %v1252 = vsel %vm489, %v996, 0
    %v1255 = vsel %vm489, %v1001, 0
    %1257 = vmatprep.subr.mxu0 0.0
    %1258 = vmatpush1.xpose.msra.mxu0 %v1246
    %1259 = vmatprep.subr.mxu0 0.0
    %1260 = vmatpush1.xpose.msra.mxu0 %v1249
    %1261 = vmatprep.subr.mxu0 0.0
    %1262 = vmatpush1.xpose.msra.mxu0 %v1252
    %1263 = vmatprep.subr.mxu0 0.0
    %1264 = vmatpush1.xpose.msra.mxu0 %v1255
    %1265 = vmatprep.subr.mxu0 0.0
    %1266 = vmatpush1.xpose.msra.mxu0 0.0
    %1267 = vmatprep.subr.mxu0 0.0
    %1268 = vmatpush1.xpose.msra.mxu0 0.0
    %1269 = vmatprep.subr.mxu0 0.0
    %1270 = vmatpush1.xpose.msra.mxu0 0.0
    %1271 = vmatprep.subr.mxu0 0.0
    %1272 = vmatpush1.xpose.msra.mxu0 0.0
    %1273 = vmatprep.subr.mxu0 0.0
    %1274 = vmatpush1.xpose.msra.mxu0 0.0
    %1275 = vmatprep.subr.mxu0 0.0
    %1276 = vmatpush1.xpose.msra.mxu0 0.0
    %1277 = vmatprep.subr.mxu0 0.0
    %1278 = vmatpush1.xpose.msra.mxu0 0.0
    %1279 = vmatprep.subr.mxu0 0.0
    %1280 = vmatpush1.xpose.msra.mxu0 0.0
    %1281 = vmatprep.subr.mxu0 0.0
    %1282 = vmatpush1.xpose.msra.mxu0 0.0
    %1283 = vmatprep.subr.mxu0 0.0
    %1284 = vmatpush1.xpose.msra.mxu0 0.0
    %1285 = vmatprep.subr.mxu0 0.0
    %1286 = vmatpush1.xpose.msra.mxu0 0.0
    %1287 = vmatprep.subr.mxu0 0.0
    %1288 = vmatpush1.xpose.msra.mxu0 0.0
    %1289 = vmatprep.subr.mxu0 0.0
    %1290 = vmatpush1.xpose.msra.mxu0 0.0
    %1291 = vmatprep.subr.mxu0 0.0
    %1292 = vmatpush1.xpose.msra.mxu0 0.0
    %1293 = vmatprep.subr.mxu0 0.0
    %1294 = vmatpush1.xpose.msra.mxu0 0.0
    %1295 = vmatprep.subr.mxu0 0.0
    %1296 = vmatpush1.xpose.msra.mxu0 0.0
    %1297 = vmatprep.subr.mxu0 0.0
    %1298 = vmatpush1.xpose.msra.mxu0 0.0
    %1299 = vmatprep.subr.mxu0 0.0
    %1300 = vmatpush1.xpose.msra.mxu0 0.0
    %1301 = vmatprep.subr.mxu0 0.0
    %1302 = vmatpush1.xpose.msra.mxu0 0.0
    %1303 = vmatprep.subr.mxu0 0.0
    %1304 = vmatpush1.xpose.msra.mxu0 0.0
    %1305 = vmatprep.subr.mxu0 0.0
    %1306 = vmatpush1.xpose.msra.mxu0 0.0
    %1307 = vmatprep.subr.mxu0 0.0
    %1308 = vmatpush1.xpose.msra.mxu0 0.0
    %1309 = vmatprep.subr.mxu0 0.0
    %1310 = vmatpush1.xpose.msra.mxu0 0.0
    %1311 = vmatprep.subr.mxu0 0.0
    %1312 = vmatpush1.xpose.msra.mxu0 0.0
    %1313 = vmatprep.subr.mxu0 0.0
    %1314 = vmatpush1.xpose.msra.mxu0 0.0
    %1315 = vmatprep.subr.mxu0 0.0
    %1316 = vmatpush1.xpose.msra.mxu0 0.0
    %1317 = vmatprep.subr.mxu0 0.0
    %1318 = vmatpush1.xpose.msra.mxu0 0.0
    %1319 = vmatprep.subr.mxu0 0.0
    %1320 = vmatpush1.xpose.msra.mxu0 0.0
    %1321 = vmatprep.mubr.f32.mxu0 0.0
    %1322 = vmatmul.mubr.f32.gmra.mrb[0].mxu0 %v1240
    %v1323 = vpop.f32.mrb[0].mxu0
    %v1324 = vadd.f32 0.0, %v1323
    %v1325 = vpop.f32.mrb[0].mxu0
    %1326 = vmatprep.mubr.f32.mxu0 0.0
    %1327 = vmatmul.mubr.f32.gmra.mrb[0].mxu0 %v1243
    %v1328 = vpop.f32.mrb[0].mxu0
    %v1329 = vadd.f32 0.0, %v1328
    %v1330 = vpop.f32.mrb[0].mxu0
    %1331 = vdwg.mxu0
    %v1332 = vadd.f32 %v1146, %v1324
    %v1333 = vadd.f32 %v1151, %v1329
    %v1334 = vtanh.pop %v1332
    %v1335 = vtanh.pop %v1333
    %v1336 = vmul.f32 %v590, %v1237
    %v1337 = vmul.f32 %v595, %v1238
    %v1338 = vsel %vm489, %v1336, 0.0
    %v1339 = vsel %vm489, %v1337, 0.0
    %v1340 = vadd.f32 %v1338, %v1339
    %v1341 = vrot.slane %v1340, 4
    %v1342 = vadd.f32 %v1340, %v1341
    %v1343 = vrot.slane %v1342, 2
    %v1344 = vadd.f32 %v1342, %v1343
    %v1345 = vrot.slane %v1344, 1
    %v1346 = vadd.f32 %v1344, %v1345
    %v1347 = vmul.f32 %v611, %v1334
    %v1348 = vmul.f32 %v616, %v1335
    %v1349 = vsel %vm47, %v1347, 0.0
    %v1350 = vsel %vm47, %v1348, 0.0
    %v1351 = vadd.f32 %v1349, %v1350
    %v1352 = vrot.slane %v1351, 4
    %v1353 = vadd.f32 %v1351, %v1352
    %v1354 = vrot.slane %v1353, 2
    %v1355 = vadd.f32 %v1353, %v1354
    %v1356 = vrot.slane %v1355, 1
    %v1357 = vadd.f32 %v1355, %v1356
    %v1358 = vsel %vm489, %v1346, -inf
    %1359 = vmax.xlane.f32.xlu0 %v1358
    %v1360 = vpop.xlane.xlu0 %1359
    %v1361 = vsub.f32 %v1346, %v1360
    %v1362 = vmul.f32 %v1361, 1.442695
    %v1363 = vpow.pop %v1362
    %v1364 = vsel %vm489, %v1363, 0.0
    %1365 = vadd.xlane.f32.xlu0 %v1364
    %v1366 = vpop.xlane.xlu0 %1365
    %v1367 = vrcp.pop %v1366
    %v1368 = vmul.f32 %v1363, %v1367
    %v1369 = vsel %vm47, %v1357, -inf
    %1370 = vmax.xlane.f32.xlu0 %v1369
    %v1371 = vpop.xlane.xlu0 %1370
    %v1372 = vsub.f32 %v1357, %v1371
    %v1373 = vmul.f32 %v1372, 1.442695
    %v1374 = vpow.pop %v1373
    %v1375 = vsel %vm47, %v1374, 0.0
    %1376 = vadd.xlane.f32.xlu0 %v1375
    %v1377 = vpop.xlane.xlu0 %1376
    %v1378 = vrcp.pop %v1377
    %v1379 = vmul.f32 %v1374, %v1378
    %v1381 = vsel %vm489, %v1368, 0
    %v1384 = vsel %vm489, %v813, 0
    %v1387 = vsel %vm489, %v814, 0
    %v1390 = vsel %vm489, %v815, 0
    %v1393 = vsel %vm489, %v816, 0
    %1395 = vmatprep.subr.mxu0 0.0
    %1396 = vmatpush1.xpose.msra.mxu0 %v1384
    %1397 = vmatprep.subr.mxu0 0.0
    %1398 = vmatpush1.xpose.msra.mxu0 %v1387
    %1399 = vmatprep.subr.mxu0 0.0
    %1400 = vmatpush1.xpose.msra.mxu0 %v1390
    %1401 = vmatprep.subr.mxu0 0.0
    %1402 = vmatpush1.xpose.msra.mxu0 %v1393
    %1403 = vmatprep.subr.mxu0 0.0
    %1404 = vmatpush1.xpose.msra.mxu0 0.0
    %1405 = vmatprep.subr.mxu0 0.0
    %1406 = vmatpush1.xpose.msra.mxu0 0.0
    %1407 = vmatprep.subr.mxu0 0.0
    %1408 = vmatpush1.xpose.msra.mxu0 0.0
    %1409 = vmatprep.subr.mxu0 0.0
    %1410 = vmatpush1.xpose.msra.mxu0 0.0
    %1411 = vmatprep.subr.mxu0 0.0
    %1412 = vmatpush1.xpose.msra.mxu0 0.0
    %1413 = vmatprep.subr.mxu0 0.0
    %1414 = vmatpush1.xpose.msra.mxu0 0.0
    %1415 = vmatprep.subr.mxu0 0.0
    %1416 = vmatpush1.xpose.msra.mxu0 0.0
    %1417 = vmatprep.subr.mxu0 0.0
    %1418 = vmatpush1.xpose.msra.mxu0 0.0
    %1419 = vmatprep.subr.mxu0 0.0
    %1420 = vmatpush1.xpose.msra.mxu0 0.0
    %1421 = vmatprep.subr.mxu0 0.0
    %1422 = vmatpush1.xpose.msra.mxu0 0.0
    %1423 = vmatprep.subr.mxu0 0.0
    %1424 = vmatpush1.xpose.msra.mxu0 0.0
    %1425 = vmatprep.subr.mxu0 0.0
    %1426 = vmatpush1.xpose.msra.mxu0 0.0
    %1427 = vmatprep.subr.mxu0 0.0
    %1428 = vmatpush1.xpose.msra.mxu0 0.0
    %1429 = vmatprep.subr.mxu0 0.0
    %1430 = vmatpush1.xpose.msra.mxu0 0.0
    %1431 = vmatprep.subr.mxu0 0.0
    %1432 = vmatpush1.xpose.msra.mxu0 0.0
    %1433 = vmatprep.subr.mxu0 0.0
    %1434 = vmatpush1.xpose.msra.mxu0 0.0
    %1435 = vmatprep.subr.mxu0 0.0
    %1436 = vmatpush1.xpose.msra.mxu0 0.0
    %1437 = vmatprep.subr.mxu0 0.0
    %1438 = vmatpush1.xpose.msra.mxu0 0.0
    %1439 = vmatprep.subr.mxu0 0.0
    %1440 = vmatpush1.xpose.msra.mxu0 0.0
    %1441 = vmatprep.subr.mxu0 0.0
    %1442 = vmatpush1.xpose.msra.mxu0 0.0
    %1443 = vmatprep.subr.mxu0 0.0
    %1444 = vmatpush1.xpose.msra.mxu0 0.0
    %1445 = vmatprep.subr.mxu0 0.0
    %1446 = vmatpush1.xpose.msra.mxu0 0.0
    %1447 = vmatprep.subr.mxu0 0.0
    %1448 = vmatpush1.xpose.msra.mxu0 0.0
    %1449 = vmatprep.subr.mxu0 0.0
    %1450 = vmatpush1.xpose.msra.mxu0 0.0
    %1451 = vmatprep.subr.mxu0 0.0
    %1452 = vmatpush1.xpose.msra.mxu0 0.0
    %1453 = vmatprep.subr.mxu0 0.0
    %1454 = vmatpush1.xpose.msra.mxu0 0.0
    %1455 = vmatprep.subr.mxu0 0.0
    %1456 = vmatpush1.xpose.msra.mxu0 0.0
    %1457 = vmatprep.subr.mxu0 0.0
    %1458 = vmatpush1.xpose.msra.mxu0 0.0
    %1459 = vmatprep.mubr.f32.mxu0 0.0
    %1460 = vmatmul.mubr.f32.gmra.mrb[0].mxu0 %v1381
    %v1461 = vpop.f32.mrb[0].mxu0
    %v1462 = vadd.f32 0.0, %v1461
    %v1463 = vpop.f32.mrb[0].mxu0
    %1464 = vdwg.mxu0
    %v1466 = vsel %vm47, %v1379, 0
    %1468 = vmatprep.subr.mxu0 0.0
    %1469 = vmatpush1.xpose.msra.mxu0 %v908
    %1470 = vmatprep.subr.mxu0 0.0
    %1471 = vmatpush1.xpose.msra.mxu0 %v911
    %1472 = vmatprep.subr.mxu0 0.0
    %1473 = vmatpush1.xpose.msra.mxu0 %v914
    %1474 = vmatprep.subr.mxu0 0.0
    %1475 = vmatpush1.xpose.msra.mxu0 %v917
    %1476 = vmatprep.subr.mxu0 0.0
    %1477 = vmatpush1.xpose.msra.mxu0 0.0
    %1478 = vmatprep.subr.mxu0 0.0
    %1479 = vmatpush1.xpose.msra.mxu0 0.0
    %1480 = vmatprep.subr.mxu0 0.0
    %1481 = vmatpush1.xpose.msra.mxu0 0.0
    %1482 = vmatprep.subr.mxu0 0.0
    %1483 = vmatpush1.xpose.msra.mxu0 0.0
    %1484 = vmatprep.subr.mxu0 0.0
    %1485 = vmatpush1.xpose.msra.mxu0 0.0
    %1486 = vmatprep.subr.mxu0 0.0
    %1487 = vmatpush1.xpose.msra.mxu0 0.0
    %1488 = vmatprep.subr.mxu0 0.0
    %1489 = vmatpush1.xpose.msra.mxu0 0.0
    %1490 = vmatprep.subr.mxu0 0.0
    %1491 = vmatpush1.xpose.msra.mxu0 0.0
    %1492 = vmatprep.subr.mxu0 0.0
    %1493 = vmatpush1.xpose.msra.mxu0 0.0
    %1494 = vmatprep.subr.mxu0 0.0
    %1495 = vmatpush1.xpose.msra.mxu0 0.0
    %1496 = vmatprep.subr.mxu0 0.0
    %1497 = vmatpush1.xpose.msra.mxu0 0.0
    %1498 = vmatprep.subr.mxu0 0.0
    %1499 = vmatpush1.xpose.msra.mxu0 0.0
    %1500 = vmatprep.subr.mxu0 0.0
    %1501 = vmatpush1.xpose.msra.mxu0 0.0
    %1502 = vmatprep.subr.mxu0 0.0
    %1503 = vmatpush1.xpose.msra.mxu0 0.0
    %1504 = vmatprep.subr.mxu0 0.0
    %1505 = vmatpush1.xpose.msra.mxu0 0.0
    %1506 = vmatprep.subr.mxu0 0.0
    %1507 = vmatpush1.xpose.msra.mxu0 0.0
    %1508 = vmatprep.subr.mxu0 0.0
    %1509 = vmatpush1.xpose.msra.mxu0 0.0
    %1510 = vmatprep.subr.mxu0 0.0
    %1511 = vmatpush1.xpose.msra.mxu0 0.0
    %1512 = vmatprep.subr.mxu0 0.0
    %1513 = vmatpush1.xpose.msra.mxu0 0.0
    %1514 = vmatprep.subr.mxu0 0.0
    %1515 = vmatpush1.xpose.msra.mxu0 0.0
    %1516 = vmatprep.subr.mxu0 0.0
    %1517 = vmatpush1.xpose.msra.mxu0 0.0
    %1518 = vmatprep.subr.mxu0 0.0
    %1519 = vmatpush1.xpose.msra.mxu0 0.0
    %1520 = vmatprep.subr.mxu0 0.0
    %1521 = vmatpush1.xpose.msra.mxu0 0.0
    %1522 = vmatprep.subr.mxu0 0.0
    %1523 = vmatpush1.xpose.msra.mxu0 0.0
    %1524 = vmatprep.subr.mxu0 0.0
    %1525 = vmatpush1.xpose.msra.mxu0 0.0
    %1526 = vmatprep.subr.mxu0 0.0
    %1527 = vmatpush1.xpose.msra.mxu0 0.0
    %1528 = vmatprep.subr.mxu0 0.0
    %1529 = vmatpush1.xpose.msra.mxu0 0.0
    %1530 = vmatprep.subr.mxu0 0.0
    %1531 = vmatpush1.xpose.msra.mxu0 0.0
    %1532 = vmatprep.mubr.f32.mxu0 0.0
    %1533 = vmatmul.mubr.f32.gmra.mrb[0].mxu0 %v1466
    %v1534 = vpop.f32.mrb[0].mxu0
    %v1535 = vadd.f32 0.0, %v1534
    %v1536 = vpop.f32.mrb[0].mxu0
    %1537 = vdwg.mxu0
    %1538 = vst.msk [vmem:[#allocation2 + $0x1] sm:$0x1] %vm809, %v1462
    %1539 = vst.msk [vmem:[#allocation2 + $0x3] sm:$0x1] %vm809, %v1535
    // Predicated region
    $region30: #{tpu_custom_call.1} parent=1 // pred_check
      _
    $region31: #{tpu_custom_call.1} parent=1 // pred_check_branch
      %1541 = sbr.rel (0) target = $region33
    $region32: #{tpu_custom_call.1} parent=1 // pred_region
      %s1543 = ssub.s32 64, 64
      %1544 = vsyncadd [#allocation3], %s1543
      %s1546 = sshll.u32 [#allocation2], 4
      %s1547 = int_to_ptr.vmem [resolvable:$true] %s1546
      %1549 = dma.vmem_to_hbm [thread:$0]  %s1547, 64, %s7, [#allocation3]
    $region33: #{tpu_custom_call.1} parent=1 // pred_fallthru
      _
    // Predicated region
    $region34: #{tpu_custom_call.1} parent=1 // pred_check
      _
    $region35: #{tpu_custom_call.1} parent=1 // pred_check_branch
      %1551 = sbr.rel (0) target = $region37
    $region36: #{tpu_custom_call.1} parent=1 // pred_region
      %1552 = dma.done [#allocation3], 64
    $region37: #{tpu_custom_call.1} parent=1 // pred_fallthru
      _
    %1553 = vsyncpa [#allocation3], 1

</llo_original>
